<compile_context>
chip_gen: v7x
topology: tpu7x:2x2x1
jax: 0.10.0
libtpu: 0.0.40
codegen_flags: <defaults>
</compile_context>

<pallas_src>
import functools

import jax
import jax.numpy as jnp
import numpy as np
from jax.experimental import pallas as pl
from jax.experimental.pallas import tpu as pltpu

CLIP_VAL = 5.0
BN_EPS = 1e-5
LANE = 128
SUBLANE = 8


def _round_up(x, m):
    return (x + m - 1) // m * m


def _pad2d(a, rows, cols):
    r, c = a.shape
    if r == rows and c == cols:
        return a
    return jnp.pad(a, ((0, rows - r), (0, cols - c)))


def _block_diag(a, b):
    ra, ca = a.shape
    rb, cb = b.shape
    top = jnp.concatenate([a, jnp.zeros((ra, cb), a.dtype)], axis=1)
    bot = jnp.concatenate([jnp.zeros((rb, ca), b.dtype), b], axis=1)
    return jnp.concatenate([top, bot], axis=0)


def _probe_single_buffer_support():
    # pipeline_mode=pl.Buffered(1) on resident specs halves their VMEM cost;
    # probe so we degrade gracefully if this Pallas build rejects it.
    try:
        pl.BlockSpec((SUBLANE, LANE), lambda i: (0, 0), pipeline_mode=pl.Buffered(1))
        return True
    except Exception:
        return False


_SINGLE_BUFFER_OK = _probe_single_buffer_support()


def _device_kind():
    try:
        return jax.devices()[0].device_kind.lower()
    except Exception:
        return ""


def _vmem_cap_bytes(kind):
    try:
        phys = int(pltpu.get_tpu_info().vmem_capacity_bytes)
    except Exception:
        phys = (64 << 20) if "v7" in kind else (128 << 20)
    # Leave 1/8 of physical VMEM for Mosaic-internal scratch; never request more
    # than ~100 MiB (v5e/v6e) -> ~56 MiB on v7x's 64 MiB per-TC VMEM.
    return int(min(phys - phys // 8, 100 << 20))


def _rnd_kernel(obs_ref, bn_ref, w1_ref, b1_ref, w2_ref, b2_ref, w3_ref, b3_ref,
                out_ref, *, hidden_pad, inv_rep, fused):
    mm_dtype = w1_ref.dtype

    # BatchNorm (batch stats precomputed over the full batch in the wrapper) + clamp.
    x = obs_ref[...].astype(jnp.float32)
    bn = bn_ref[...]                       # row 0 = mean, row 1 = 1/sqrt(var+eps)
    xn = (x - bn[0:1, :]) * bn[1:2, :]
    xn = jnp.clip(xn, -CLIP_VAL, CLIP_VAL).astype(mm_dtype)

    # Layer 1: predictor & target fused along the output (lane) axis.
    h = jnp.dot(xn, w1_ref[...], preferred_element_type=jnp.float32) + b1_ref[...]
    h = jnp.maximum(h, 0.0)

    if fused:
        # v6e / v7x (256-wide MXU): layer 2 as one block-diagonal matmul over the
        # whole (tile_b, 2*Hp) activation.  bias-add -> ReLU -> single bf16 cast.
        h = h.astype(mm_dtype)
        h2 = jnp.dot(h, w2_ref[...], preferred_element_type=jnp.float32) + b2_ref[...]
        h2 = jnp.maximum(h2, 0.0).astype(mm_dtype)
        # Layer 3 folded into the difference: diff = h2 @ [-pw3 ; tw3] + (tb3 - pb3).
        diff = (jnp.dot(h2, w3_ref[...], preferred_element_type=jnp.float32)
                + b3_ref[...])
    else:
        # v5e / older (4x 128x128 MXUs): two interleaved 128-wide chains.
        # Activations stay f32 (no bf16 VPU), cast only at the matmul inputs.
        h_p = h[:, :hidden_pad].astype(mm_dtype)
        h_t = h[:, hidden_pad:].astype(mm_dtype)
        hp = (jnp.dot(h_p, w2_ref[0], preferred_element_type=jnp.float32)
              + b2_ref[:, :hidden_pad])
        ht = (jnp.dot(h_t, w2_ref[1], preferred_element_type=jnp.float32)
              + b2_ref[:, hidden_pad:])
        hp = jnp.maximum(hp, 0.0).astype(mm_dtype)
        ht = jnp.maximum(ht, 0.0).astype(mm_dtype)
        # w3 rows [0:Hp) hold -pw3, rows [Hp:2Hp) hold tw3 -> sum gives targ - pred.
        diff = (jnp.dot(hp, w3_ref[:hidden_pad, :], preferred_element_type=jnp.float32)
                + jnp.dot(ht, w3_ref[hidden_pad:, :], preferred_element_type=jnp.float32)
                + b3_ref[...])

    # Padded rep columns are exactly zero (zero-padded weights and biases).
    err = jnp.sum(diff * diff, axis=-1, keepdims=True) * inv_rep
    out_ref[...] = err.astype(out_ref.dtype)


def rnd_forward(obs, pred_params, targ_params, *, block_b=512,
                matmul_dtype=jnp.bfloat16, fuse_chains=None,
                single_buffer_residents=None):
    """RND forward (states path).  obs: (B, D) f32; params: (w1,b1,w2,b2,w3,b3)."""
    obs = obs.astype(jnp.float32)
    B, D = obs.shape
    pw1, pb1, pw2, pb2, pw3, pb3 = [jnp.asarray(p, jnp.float32) for p in pred_params]
    tw1, tb1, tw2, tb2, tw3, tb3 = [jnp.asarray(p, jnp.float32) for p in targ_params]
    H = pw1.shape[1]
    R = pw3.shape[1]

    kind = _device_kind()
    if fuse_chains is None:
        # Block-diag layer-2 fusion fills the 256x256 MXU (v6e/v7x); on v5e and
        # older (128x128 MXUs) it wastes half the pushes on zero blocks.
        fuse_chains = ("v6" in kind) or ("v7" in kind)
    if single_buffer_residents is None:
        single_buffer_residents = True
    use_sb = bool(single_buffer_residents) and _SINGLE_BUFFER_OK
    resident_bufs = 1 if use_sb else 2

    # ---- BatchNorm1d(affine=False), training mode: per-feature batch stats.
    # Cross-batch reduction hoisted out of the kernel so it can tile over batch.
    mean = jnp.mean(obs, axis=0, keepdims=True)
    var = jnp.mean(jnp.square(obs - mean), axis=0, keepdims=True)   # biased var
    inv_std = jax.lax.rsqrt(var + BN_EPS)

    # ---- Lane-dense padding of feature dims.
    Dp = _round_up(D, LANE)
    Hp = _round_up(H, LANE)
    Rp = _round_up(R, LANE)
    mmt = matmul_dtype

    bn = jnp.concatenate([_pad2d(mean, 1, Dp), _pad2d(inv_std, 1, Dp)], axis=0)  # (2,Dp)

    pw1p, tw1p = _pad2d(pw1, Dp, Hp), _pad2d(tw1, Dp, Hp)
    pw2p, tw2p = _pad2d(pw2, Hp, Hp), _pad2d(tw2, Hp, Hp)
    pw3p, tw3p = _pad2d(pw3, Hp, Rp), _pad2d(tw3, Hp, Rp)

    w1 = jnp.concatenate([pw1p, tw1p], axis=1).astype(mmt)             # (Dp, 2Hp)
    b1 = jnp.concatenate([_pad2d(pb1.reshape(1, -1), 1, Hp),
                          _pad2d(tb1.reshape(1, -1), 1, Hp)], axis=1)  # (1, 2Hp) f32
    if fuse_chains:
        w2 = _block_diag(pw2p, tw2p).astype(mmt)                       # (2Hp, 2Hp)
    else:
        w2 = jnp.stack([pw2p, tw2p]).astype(mmt)                       # (2, Hp, Hp)
    b2 = jnp.concatenate([_pad2d(pb2.reshape(1, -1), 1, Hp),
                          _pad2d(tb2.reshape(1, -1), 1, Hp)], axis=1)  # (1, 2Hp) f32
    # Layer 3 folded into the (target - prediction) difference.
    w3 = jnp.concatenate([-pw3p, tw3p], axis=0).astype(mmt)            # (2Hp, Rp)
    b3 = (_pad2d(tb3.reshape(1, -1), 1, Rp)
          - _pad2d(pb3.reshape(1, -1), 1, Rp))                         # (1, Rp) f32

    resident_args = (bn, w1, b1, w2, b2, w3, b3)
    resident_bytes = sum(int(np.prod(a.shape)) * a.dtype.itemsize for a in resident_args)

    # ---- Batch tile sizing: big tiles amortize the ~0.35us per-grid-step
    # overhead; shrink only if the VMEM estimate exceeds the per-chip cap.
    vmem_cap = _vmem_cap_bytes(kind)
    tile_b = _round_up(min(block_b, _round_up(B, SUBLANE)), SUBLANE)

    def _estimate(tb):
        streamed = 2 * (tb * Dp * 4 + tb * 4)                 # double-buffered obs/out
        temps = tb * 4 * (2 * Dp + 5 * Hp + 2 * Rp)           # in-kernel temporaries
        return resident_bufs * resident_bytes + streamed + temps

    while tile_b > SUBLANE and _estimate(tile_b) > vmem_cap:
        tile_b = max(SUBLANE, _round_up(tile_b // 2, SUBLANE))
    Bp = _round_up(B, tile_b)

    # Pad obs only when actually misaligned (skips an HBM round trip otherwise).
    obs_p = _pad2d(obs, Bp, Dp)

    vmem_limit = int(min(vmem_cap, max(2 * _estimate(tile_b), 32 << 20)))
    grid = (Bp // tile_b,)
    kernel = functools.partial(_rnd_kernel, hidden_pad=Hp, inv_rep=1.0 / R,
                               fused=fuse_chains)

    def _run(single_buffer):
        def _resident_spec(shape):
            zeros = (0,) * len(shape)
            idx = lambda i, _z=zeros: _z
            if single_buffer:
                return pl.BlockSpec(shape, idx, pipeline_mode=pl.Buffered(1))
            return pl.BlockSpec(shape, idx)

        in_specs = [pl.BlockSpec((tile_b, Dp), lambda i: (i, 0))]       # obs (streamed)
        in_specs += [_resident_spec(a.shape) for a in resident_args]    # stats/weights

        return pl.pallas_call(
            kernel,
            out_shape=jax.ShapeDtypeStruct((Bp, 1), jnp.float32),
            grid=grid,
            in_specs=in_specs,
            # Natural (tile_b, 1) output block: only B*4 bytes of HBM writeback
            # (no 128x broadcast amplification); the masked stores are tiny.
            out_specs=pl.BlockSpec((tile_b, 1), lambda i: (i, 0)),
            compiler_params=pltpu.CompilerParams(
                dimension_semantics=("parallel",),
                vmem_limit_bytes=vmem_limit,
            ),
        )(obs_p, *resident_args)

    try:
        out_p = _run(use_sb)
    except Exception:
        if not use_sb:
            raise
        out_p = _run(False)   # fall back to default double-buffered residents

    return out_p[:B]


def _make_mlp_params(key, obs_dim, hidden_dim, rnd_rep_dim):
    k1, k2, k3 = jax.random.split(key, 3)
    # Deterministic synthetic init (stand-in for utils.weight_init's orthogonal init).
    w1 = jax.random.normal(k1, (obs_dim, hidden_dim), jnp.float32) / np.sqrt(obs_dim)
    w2 = jax.random.normal(k2, (hidden_dim, hidden_dim), jnp.float32) / np.sqrt(hidden_dim)
    w3 = jax.random.normal(k3, (hidden_dim, rnd_rep_dim), jnp.float32) / np.sqrt(hidden_dim)
    b1 = jnp.zeros((1, hidden_dim), jnp.float32)
    b2 = jnp.zeros((1, hidden_dim), jnp.float32)
    b3 = jnp.zeros((1, rnd_rep_dim), jnp.float32)
    return (w1, b1, w2, b2, w3, b3)


def _reference(obs, pred_params, targ_params):
    mean = jnp.mean(obs, axis=0, keepdims=True)
    var = jnp.mean(jnp.square(obs - mean), axis=0, keepdims=True)
    x = (obs - mean) * jax.lax.rsqrt(var + BN_EPS)
    x = jnp.clip(x, -CLIP_VAL, CLIP_VAL)

    def mlp(inp, p):
        w1, b1, w2, b2, w3, b3 = p
        h = jnp.maximum(inp @ w1 + b1.reshape(1, -1), 0.0)
        h = jnp.maximum(h @ w2 + b2.reshape(1, -1), 0.0)
        return h @ w3 + b3.reshape(1, -1)

    pred = mlp(x, pred_params)
    targ = mlp(x, targ_params)
    return jnp.mean(jnp.square(targ - pred), axis=-1, keepdims=True)


if __name__ == "__main__":
    key = jax.random.PRNGKey(0)

    # ---- Case 1: small shapes matching the module's states-path usage.
    B, OBS_DIM, HIDDEN_DIM, RND_REP_DIM = 8, 32, 32, 16
    k_obs, k_pred, k_targ, key = jax.random.split(key, 4)
    obs = jax.random.normal(k_obs, (B, OBS_DIM), jnp.float32) * 2.0 + 0.5
    pred_params = _make_mlp_params(k_pred, OBS_DIM, HIDDEN_DIM, RND_REP_DIM)
    targ_params = _make_mlp_params(k_targ, OBS_DIM, HIDDEN_DIM, RND_REP_DIM)

    ref = jax.block_until_ready(_reference(obs, pred_params, targ_params))

    # f32 matmuls; exercise both layer-2/3 code paths (block-diag and split chains).
    for fuse in (True, False):
        out_f32 = jax.block_until_ready(
            rnd_forward(obs, pred_params, targ_params,
                        matmul_dtype=jnp.float32, fuse_chains=fuse))
        assert out_f32.shape == (B, 1), out_f32.shape
        np.testing.assert_allclose(np.asarray(out_f32), np.asarray(ref),
                                   rtol=2e-4, atol=1e-5)

    # Default config: chip-gated fusion, bf16 matmul inputs (f32 accumulation).
    out_bf16 = jax.block_until_ready(rnd_forward(obs, pred_params, targ_params))
    assert out_bf16.shape == (B, 1), out_bf16.shape
    np.testing.assert_allclose(np.asarray(out_bf16), np.asarray(ref),
                               rtol=1e-1, atol=1e-2)

    # ---- Case 2: non-aligned dims and a multi-tile batch grid (padding + grid).
    B2, D2, H2, R2 = 200, 24, 40, 20
    k_obs2, k_pred2, k_targ2, key = jax.random.split(key, 4)
    obs2 = jax.random.normal(k_obs2, (B2, D2), jnp.float32)
    pp2 = _make_mlp_params(k_pred2, D2, H2, R2)
    tp2 = _make_mlp_params(k_targ2, D2, H2, R2)
    ref2 = jax.block_until_ready(_reference(obs2, pp2, tp2))
    out2 = jax.block_until_ready(
        rnd_forward(obs2, pp2, tp2, block_b=64, matmul_dtype=jnp.float32))
    assert out2.shape == (B2, 1), out2.shape
    np.testing.assert_allclose(np.asarray(out2), np.asarray(ref2),
                               rtol=2e-4, atol=1e-5)

    print("KERNEL_OK")
</pallas_src>

<mosaic_0001>
module attributes {stable_mosaic.version = 11 : i64} {
  func.func @_rnd_kernel(%arg0: i32, %arg1: memref<8x128xf32, #tpu.memory_space<vmem>>, %arg2: memref<2x128xf32, #tpu.memory_space<vmem>>, %arg3: memref<128x256xf32, #tpu.memory_space<vmem>>, %arg4: memref<1x256xf32, #tpu.memory_space<vmem>>, %arg5: memref<256x256xf32, #tpu.memory_space<vmem>>, %arg6: memref<1x256xf32, #tpu.memory_space<vmem>>, %arg7: memref<256x128xf32, #tpu.memory_space<vmem>>, %arg8: memref<1x128xf32, #tpu.memory_space<vmem>>, %arg9: memref<8x1xf32, #tpu.memory_space<vmem>>) attributes {dimension_semantics = [#tpu.dimension_semantics<parallel>], iteration_bounds = array<i64: 1>, scalar_prefetch = 0 : i64, scratch_operands = 0 : i64, tpu.core_type = #tpu.core_type<tc>, window_params = [{transform_indices = @transform_0, window_bounds = array<i64: 8, 128>}, {pipeline_mode = #tpu.pipeline_mode<synchronous>, transform_indices = @transform_1, window_bounds = array<i64: 2, 128>}, {pipeline_mode = #tpu.pipeline_mode<synchronous>, transform_indices = @transform_2, window_bounds = array<i64: 128, 256>}, {pipeline_mode = #tpu.pipeline_mode<synchronous>, transform_indices = @transform_3, window_bounds = array<i64: 1, 256>}, {pipeline_mode = #tpu.pipeline_mode<synchronous>, transform_indices = @transform_4, window_bounds = array<i64: 256, 256>}, {pipeline_mode = #tpu.pipeline_mode<synchronous>, transform_indices = @transform_5, window_bounds = array<i64: 1, 256>}, {pipeline_mode = #tpu.pipeline_mode<synchronous>, transform_indices = @transform_6, window_bounds = array<i64: 256, 128>}, {pipeline_mode = #tpu.pipeline_mode<synchronous>, transform_indices = @transform_7, window_bounds = array<i64: 1, 128>}, {transform_indices = @transform_8, window_bounds = array<i64: 8, 1>}]} {
    %c0 = arith.constant 0 : index
    %c0_0 = arith.constant 0 : index
    %0 = vector.load %arg1[%c0, %c0_0] : memref<8x128xf32, #tpu.memory_space<vmem>>, vector<8x128xf32>
    %c0_1 = arith.constant 0 : index
    %c0_2 = arith.constant 0 : index
    %1 = vector.load %arg2[%c0_1, %c0_2] : memref<2x128xf32, #tpu.memory_space<vmem>>, vector<2x128xf32>
    %2 = vector.extract_strided_slice %1 {offsets = [0, 0], sizes = [1, 128], strides = [1, 1]} : vector<2x128xf32> to vector<1x128xf32>
    %3 = vector.broadcast %2 : vector<1x128xf32> to vector<8x128xf32>
    %4 = arith.subf %0, %3 : vector<8x128xf32>
    %5 = vector.extract_strided_slice %1 {offsets = [1, 0], sizes = [1, 128], strides = [1, 1]} : vector<2x128xf32> to vector<1x128xf32>
    %6 = vector.broadcast %5 : vector<1x128xf32> to vector<8x128xf32>
    %7 = arith.mulf %4, %6 : vector<8x128xf32>
    %cst = arith.constant -5.000000e+00 : f32
    %cst_3 = arith.constant 5.000000e+00 : f32
    %8 = vector.broadcast %cst : f32 to vector<8x128xf32>
    %9 = arith.maximumf %8, %7 : vector<8x128xf32>
    %10 = vector.broadcast %cst_3 : f32 to vector<8x128xf32>
    %11 = arith.minimumf %10, %9 : vector<8x128xf32>
    %c0_4 = arith.constant 0 : index
    %c0_5 = arith.constant 0 : index
    %12 = vector.load %arg3[%c0_4, %c0_5] : memref<128x256xf32, #tpu.memory_space<vmem>>, vector<128x256xf32>
    %cst_6 = arith.constant dense<0.000000e+00> : vector<8x256xf32>
    %13 = tpu.matmul %11, %12, %cst_6 {dimension_numbers = #tpu.dot_dimension_numbers<[1], [0], [0], [1], [0, 0, 1, 1], [], []>} : vector<8x128xf32>, vector<128x256xf32>, vector<8x256xf32> -> vector<8x256xf32>
    %c0_7 = arith.constant 0 : index
    %c0_8 = arith.constant 0 : index
    %14 = vector.load %arg4[%c0_7, %c0_8] : memref<1x256xf32, #tpu.memory_space<vmem>>, vector<1x256xf32>
    %15 = vector.broadcast %14 : vector<1x256xf32> to vector<8x256xf32>
    %16 = arith.addf %13, %15 : vector<8x256xf32>
    %cst_9 = arith.constant 0.000000e+00 : f32
    %17 = vector.broadcast %cst_9 : f32 to vector<8x256xf32>
    %18 = arith.maximumf %16, %17 : vector<8x256xf32>
    %c0_10 = arith.constant 0 : index
    %c0_11 = arith.constant 0 : index
    %19 = vector.load %arg5[%c0_10, %c0_11] : memref<256x256xf32, #tpu.memory_space<vmem>>, vector<256x256xf32>
    %cst_12 = arith.constant dense<0.000000e+00> : vector<8x256xf32>
    %20 = tpu.matmul %18, %19, %cst_12 {dimension_numbers = #tpu.dot_dimension_numbers<[1], [0], [0], [1], [0, 0, 1, 1], [], []>} : vector<8x256xf32>, vector<256x256xf32>, vector<8x256xf32> -> vector<8x256xf32>
    %c0_13 = arith.constant 0 : index
    %c0_14 = arith.constant 0 : index
    %21 = vector.load %arg6[%c0_13, %c0_14] : memref<1x256xf32, #tpu.memory_space<vmem>>, vector<1x256xf32>
    %22 = vector.broadcast %21 : vector<1x256xf32> to vector<8x256xf32>
    %23 = arith.addf %20, %22 : vector<8x256xf32>
    %cst_15 = arith.constant 0.000000e+00 : f32
    %24 = vector.broadcast %cst_15 : f32 to vector<8x256xf32>
    %25 = arith.maximumf %23, %24 : vector<8x256xf32>
    %c0_16 = arith.constant 0 : index
    %c0_17 = arith.constant 0 : index
    %26 = vector.load %arg7[%c0_16, %c0_17] : memref<256x128xf32, #tpu.memory_space<vmem>>, vector<256x128xf32>
    %cst_18 = arith.constant dense<0.000000e+00> : vector<8x128xf32>
    %27 = tpu.matmul %25, %26, %cst_18 {dimension_numbers = #tpu.dot_dimension_numbers<[1], [0], [0], [1], [0, 0, 1, 1], [], []>} : vector<8x256xf32>, vector<256x128xf32>, vector<8x128xf32> -> vector<8x128xf32>
    %c0_19 = arith.constant 0 : index
    %c0_20 = arith.constant 0 : index
    %28 = vector.load %arg8[%c0_19, %c0_20] : memref<1x128xf32, #tpu.memory_space<vmem>>, vector<1x128xf32>
    %29 = vector.broadcast %28 : vector<1x128xf32> to vector<8x128xf32>
    %30 = arith.addf %27, %29 : vector<8x128xf32>
    %31 = arith.mulf %30, %30 : vector<8x128xf32>
    %cst_21 = arith.constant dense<0.000000e+00> : vector<8xf32>
    %32 = vector.multi_reduction <add>, %31, %cst_21 [1] : vector<8x128xf32> to vector<8xf32>
    %33 = vector.shape_cast %32 : vector<8xf32> to vector<8x1xf32>
    %cst_22 = arith.constant 6.250000e-02 : f32
    %34 = vector.broadcast %cst_22 : f32 to vector<8x1xf32>
    %35 = arith.mulf %33, %34 : vector<8x1xf32>
    %c0_23 = arith.constant 0 : index
    %c0_24 = arith.constant 0 : index
    %36 = vector.load %arg9[%c0_23, %c0_24] : memref<8x1xf32, #tpu.memory_space<vmem>>, vector<8x1xf32>
    tpu.vector_store %arg9[%c0_23, %c0_24], %35 {strides = array<i32>} : memref<8x1xf32, #tpu.memory_space<vmem>>, vector<8x1xf32>,
    return
  }
  func.func @transform_0(%arg0: i32) -> (i32, i32) {
    %c0_i32 = arith.constant 0 : i32
    %c0_i32_0 = arith.constant 0 : i32
    return %arg0, %c0_i32 : i32, i32
  }
  func.func @transform_1(%arg0: i32) -> (i32, i32) {
    %c0_i32 = arith.constant 0 : i32
    %c0_i32_0 = arith.constant 0 : i32
    %c0_i32_1 = arith.constant 0 : i32
    return %c0_i32, %c0_i32_0 : i32, i32
  }
  func.func @transform_2(%arg0: i32) -> (i32, i32) {
    %c0_i32 = arith.constant 0 : i32
    %c0_i32_0 = arith.constant 0 : i32
    %c0_i32_1 = arith.constant 0 : i32
    return %c0_i32, %c0_i32_0 : i32, i32
  }
  func.func @transform_3(%arg0: i32) -> (i32, i32) {
    %c0_i32 = arith.constant 0 : i32
    %c0_i32_0 = arith.constant 0 : i32
    %c0_i32_1 = arith.constant 0 : i32
    return %c0_i32, %c0_i32_0 : i32, i32
  }
  func.func @transform_4(%arg0: i32) -> (i32, i32) {
    %c0_i32 = arith.constant 0 : i32
    %c0_i32_0 = arith.constant 0 : i32
    %c0_i32_1 = arith.constant 0 : i32
    return %c0_i32, %c0_i32_0 : i32, i32
  }
  func.func @transform_5(%arg0: i32) -> (i32, i32) {
    %c0_i32 = arith.constant 0 : i32
    %c0_i32_0 = arith.constant 0 : i32
    %c0_i32_1 = arith.constant 0 : i32
    return %c0_i32, %c0_i32_0 : i32, i32
  }
  func.func @transform_6(%arg0: i32) -> (i32, i32) {
    %c0_i32 = arith.constant 0 : i32
    %c0_i32_0 = arith.constant 0 : i32
    %c0_i32_1 = arith.constant 0 : i32
    return %c0_i32, %c0_i32_0 : i32, i32
  }
  func.func @transform_7(%arg0: i32) -> (i32, i32) {
    %c0_i32 = arith.constant 0 : i32
    %c0_i32_0 = arith.constant 0 : i32
    %c0_i32_1 = arith.constant 0 : i32
    return %c0_i32, %c0_i32_0 : i32, i32
  }
  func.func @transform_8(%arg0: i32) -> (i32, i32) {
    %c0_i32 = arith.constant 0 : i32
    %c0_i32_0 = arith.constant 0 : i32
    return %arg0, %c0_i32 : i32, i32
  }
}

module attributes {stable_mosaic.version = 11 : i64} {
  func.func @_rnd_kernel(%arg0: i32, %arg1: memref<8x128xf32, #tpu.memory_space<vmem>>, %arg2: memref<2x128xf32, #tpu.memory_space<vmem>>, %arg3: memref<128x256xf32, #tpu.memory_space<vmem>>, %arg4: memref<1x256xf32, #tpu.memory_space<vmem>>, %arg5: memref<256x256xf32, #tpu.memory_space<vmem>>, %arg6: memref<1x256xf32, #tpu.memory_space<vmem>>, %arg7: memref<256x128xf32, #tpu.memory_space<vmem>>, %arg8: memref<1x128xf32, #tpu.memory_space<vmem>>, %arg9: memref<8x1xf32, #tpu.memory_space<vmem>>) attributes {dimension_semantics = [#tpu.dimension_semantics<parallel>], iteration_bounds = array<i64: 1>, scalar_prefetch = 0 : i64, scratch_operands = 0 : i64, tpu.core_type = #tpu.core_type<tc>, window_params = [{transform_indices = @transform_0, window_bounds = array<i64: 8, 128>}, {pipeline_mode = #tpu.pipeline_mode<synchronous>, transform_indices = @transform_1, window_bounds = array<i64: 2, 128>}, {pipeline_mode = #tpu.pipeline_mode<synchronous>, transform_indices = @transform_2, window_bounds = array<i64: 128, 256>}, {pipeline_mode = #tpu.pipeline_mode<synchronous>, transform_indices = @transform_3, window_bounds = array<i64: 1, 256>}, {pipeline_mode = #tpu.pipeline_mode<synchronous>, transform_indices = @transform_4, window_bounds = array<i64: 256, 256>}, {pipeline_mode = #tpu.pipeline_mode<synchronous>, transform_indices = @transform_5, window_bounds = array<i64: 1, 256>}, {pipeline_mode = #tpu.pipeline_mode<synchronous>, transform_indices = @transform_6, window_bounds = array<i64: 256, 128>}, {pipeline_mode = #tpu.pipeline_mode<synchronous>, transform_indices = @transform_7, window_bounds = array<i64: 1, 128>}, {transform_indices = @transform_8, window_bounds = array<i64: 8, 1>}]} {
    %c0 = arith.constant 0 : index
    %c0_0 = arith.constant 0 : index
    %0 = vector.load %arg1[%c0, %c0_0] : memref<8x128xf32, #tpu.memory_space<vmem>>, vector<8x128xf32>
    %c0_1 = arith.constant 0 : index
    %c0_2 = arith.constant 0 : index
    %1 = vector.load %arg2[%c0_1, %c0_2] : memref<2x128xf32, #tpu.memory_space<vmem>>, vector<2x128xf32>
    %2 = vector.extract_strided_slice %1 {offsets = [0, 0], sizes = [1, 128], strides = [1, 1]} : vector<2x128xf32> to vector<1x128xf32>
    %3 = vector.broadcast %2 : vector<1x128xf32> to vector<8x128xf32>
    %4 = arith.subf %0, %3 : vector<8x128xf32>
    %5 = vector.extract_strided_slice %1 {offsets = [1, 0], sizes = [1, 128], strides = [1, 1]} : vector<2x128xf32> to vector<1x128xf32>
    %6 = vector.broadcast %5 : vector<1x128xf32> to vector<8x128xf32>
    %7 = arith.mulf %4, %6 : vector<8x128xf32>
    %cst = arith.constant -5.000000e+00 : f32
    %cst_3 = arith.constant 5.000000e+00 : f32
    %8 = vector.broadcast %cst : f32 to vector<8x128xf32>
    %9 = arith.maximumf %8, %7 : vector<8x128xf32>
    %10 = vector.broadcast %cst_3 : f32 to vector<8x128xf32>
    %11 = arith.minimumf %10, %9 : vector<8x128xf32>
    %c0_4 = arith.constant 0 : index
    %c0_5 = arith.constant 0 : index
    %12 = vector.load %arg3[%c0_4, %c0_5] : memref<128x256xf32, #tpu.memory_space<vmem>>, vector<128x256xf32>
    %cst_6 = arith.constant dense<0.000000e+00> : vector<8x256xf32>
    %13 = tpu.matmul %11, %12, %cst_6 {dimension_numbers = #tpu.dot_dimension_numbers<[1], [0], [0], [1], [0, 0, 1, 1], [], []>} : vector<8x128xf32>, vector<128x256xf32>, vector<8x256xf32> -> vector<8x256xf32>
    %c0_7 = arith.constant 0 : index
    %c0_8 = arith.constant 0 : index
    %14 = vector.load %arg4[%c0_7, %c0_8] : memref<1x256xf32, #tpu.memory_space<vmem>>, vector<1x256xf32>
    %15 = vector.broadcast %14 : vector<1x256xf32> to vector<8x256xf32>
    %16 = arith.addf %13, %15 : vector<8x256xf32>
    %cst_9 = arith.constant 0.000000e+00 : f32
    %17 = vector.broadcast %cst_9 : f32 to vector<8x256xf32>
    %18 = arith.maximumf %16, %17 : vector<8x256xf32>
    %c0_10 = arith.constant 0 : index
    %c0_11 = arith.constant 0 : index
    %19 = vector.load %arg5[%c0_10, %c0_11] : memref<256x256xf32, #tpu.memory_space<vmem>>, vector<256x256xf32>
    %cst_12 = arith.constant dense<0.000000e+00> : vector<8x256xf32>
    %20 = tpu.matmul %18, %19, %cst_12 {dimension_numbers = #tpu.dot_dimension_numbers<[1], [0], [0], [1], [0, 0, 1, 1], [], []>} : vector<8x256xf32>, vector<256x256xf32>, vector<8x256xf32> -> vector<8x256xf32>
    %c0_13 = arith.constant 0 : index
    %c0_14 = arith.constant 0 : index
    %21 = vector.load %arg6[%c0_13, %c0_14] : memref<1x256xf32, #tpu.memory_space<vmem>>, vector<1x256xf32>
    %22 = vector.broadcast %21 : vector<1x256xf32> to vector<8x256xf32>
    %23 = arith.addf %20, %22 : vector<8x256xf32>
    %cst_15 = arith.constant 0.000000e+00 : f32
    %24 = vector.broadcast %cst_15 : f32 to vector<8x256xf32>
    %25 = arith.maximumf %23, %24 : vector<8x256xf32>
    %c0_16 = arith.constant 0 : index
    %c0_17 = arith.constant 0 : index
    %26 = vector.load %arg7[%c0_16, %c0_17] : memref<256x128xf32, #tpu.memory_space<vmem>>, vector<256x128xf32>
    %cst_18 = arith.constant dense<0.000000e+00> : vector<8x128xf32>
    %27 = tpu.matmul %25, %26, %cst_18 {dimension_numbers = #tpu.dot_dimension_numbers<[1], [0], [0], [1], [0, 0, 1, 1], [], []>} : vector<8x256xf32>, vector<256x128xf32>, vector<8x128xf32> -> vector<8x128xf32>
    %c0_19 = arith.constant 0 : index
    %c0_20 = arith.constant 0 : index
    %28 = vector.load %arg8[%c0_19, %c0_20] : memref<1x128xf32, #tpu.memory_space<vmem>>, vector<1x128xf32>
    %29 = vector.broadcast %28 : vector<1x128xf32> to vector<8x128xf32>
    %30 = arith.addf %27, %29 : vector<8x128xf32>
    %31 = arith.mulf %30, %30 : vector<8x128xf32>
    %cst_21 = arith.constant dense<0.000000e+00> : vector<8xf32>
    %32 = vector.multi_reduction <add>, %31, %cst_21 [1] : vector<8x128xf32> to vector<8xf32>
    %33 = vector.shape_cast %32 : vector<8xf32> to vector<8x1xf32>
    %cst_22 = arith.constant 6.250000e-02 : f32
    %34 = vector.broadcast %cst_22 : f32 to vector<8x1xf32>
    %35 = arith.mulf %33, %34 : vector<8x1xf32>
    %c0_23 = arith.constant 0 : index
    %c0_24 = arith.constant 0 : index
    %36 = vector.load %arg9[%c0_23, %c0_24] : memref<8x1xf32, #tpu.memory_space<vmem>>, vector<8x1xf32>
    tpu.vector_store %arg9[%c0_23, %c0_24], %35 {strides = array<i32>} : memref<8x1xf32, #tpu.memory_space<vmem>>, vector<8x1xf32>,
    return
  }
  func.func @transform_0(%arg0: i32) -> (i32, i32) {
    %c0_i32 = arith.constant 0 : i32
    %c0_i32_0 = arith.constant 0 : i32
    return %arg0, %c0_i32 : i32, i32
  }
  func.func @transform_1(%arg0: i32) -> (i32, i32) {
    %c0_i32 = arith.constant 0 : i32
    %c0_i32_0 = arith.constant 0 : i32
    %c0_i32_1 = arith.constant 0 : i32
    return %c0_i32, %c0_i32_0 : i32, i32
  }
  func.func @transform_2(%arg0: i32) -> (i32, i32) {
    %c0_i32 = arith.constant 0 : i32
    %c0_i32_0 = arith.constant 0 : i32
    %c0_i32_1 = arith.constant 0 : i32
    return %c0_i32, %c0_i32_0 : i32, i32
  }
  func.func @transform_3(%arg0: i32) -> (i32, i32) {
    %c0_i32 = arith.constant 0 : i32
    %c0_i32_0 = arith.constant 0 : i32
    %c0_i32_1 = arith.constant 0 : i32
    return %c0_i32, %c0_i32_0 : i32, i32
  }
  func.func @transform_4(%arg0: i32) -> (i32, i32) {
    %c0_i32 = arith.constant 0 : i32
    %c0_i32_0 = arith.constant 0 : i32
    %c0_i32_1 = arith.constant 0 : i32
    return %c0_i32, %c0_i32_0 : i32, i32
  }
  func.func @transform_5(%arg0: i32) -> (i32, i32) {
    %c0_i32 = arith.constant 0 : i32
    %c0_i32_0 = arith.constant 0 : i32
    %c0_i32_1 = arith.constant 0 : i32
    return %c0_i32, %c0_i32_0 : i32, i32
  }
  func.func @transform_6(%arg0: i32) -> (i32, i32) {
    %c0_i32 = arith.constant 0 : i32
    %c0_i32_0 = arith.constant 0 : i32
    %c0_i32_1 = arith.constant 0 : i32
    return %c0_i32, %c0_i32_0 : i32, i32
  }
  func.func @transform_7(%arg0: i32) -> (i32, i32) {
    %c0_i32 = arith.constant 0 : i32
    %c0_i32_0 = arith.constant 0 : i32
    %c0_i32_1 = arith.constant 0 : i32
    return %c0_i32, %c0_i32_0 : i32, i32
  }
  func.func @transform_8(%arg0: i32) -> (i32, i32) {
    %c0_i32 = arith.constant 0 : i32
    %c0_i32_0 = arith.constant 0 : i32
    return %arg0, %c0_i32 : i32, i32
  }
}

</mosaic_0001>

<llo_original>
// kernel: tpu_custom_call.1
$region0: #{tpu_custom_call.1}
  #allocation0 [shape = 'u32[]', space=smem, size = 0x4, offset = 0x4, fixed_abs, tag = 'smem constant byte address 0x4 - core index']
  #allocation1 [shape = 'u32[144,128]{1,0:T(1,128)}', space=vmem, size = 0x12000, scoped, tag = 'internal scratch']
  %s0 = inlined_call_operand.hbm [shape: f32[8,128], index: 0, kind: input, shape index: {}]
  %s1 = inlined_call_operand.vmem [shape: f32[2,128], index: 1, kind: input, shape index: {}]
  %s2 = inlined_call_operand.hbm [shape: f32[128,256], index: 2, kind: input, shape index: {}]
  %s3 = inlined_call_operand.vmem [shape: f32[1,256], index: 3, kind: input, shape index: {}]
  %s4 = inlined_call_operand.hbm [shape: f32[256,256], index: 4, kind: input, shape index: {}]
  %s5 = inlined_call_operand.vmem [shape: f32[1,256], index: 5, kind: input, shape index: {}]
  %s6 = inlined_call_operand.hbm [shape: f32[256,128], index: 6, kind: input, shape index: {}]
  %s7 = inlined_call_operand.vmem [shape: f32[1,128], index: 7, kind: input, shape index: {}]
  %s8 = inlined_call_operand.vmem [shape: f32[8,1], index: 8, kind: output, shape index: {}]
  %s9 = sld [smem:[#allocation0]]
  $region58: #{tpu_custom_call.1} parent=0
    _
  %s11 = ssub.s32 1, %s9
  %s12 = scalar_select 0, %s11, %s9
  $region1: #{tpu_custom_call.1} parent=0
    #allocation2 [shape = 'u8[4096]{0}', space=vmem, size = 0x1000, scoped, tag = 'input window, operand 0, single buffered']
    #allocation3 [shape = 's32[1]{0}', space=sflag, size = 0x4, scoped, tag = 'scoped memory for tpu_custom_call.1']
    #allocation4 [shape = 'u8[131072]{0}', space=vmem, size = 0x20000, scoped, tag = 'input window, operand 2, single buffered']
    #allocation5 [shape = 's32[1]{0}', space=sflag, size = 0x4, scoped, tag = 'scoped memory for tpu_custom_call.1']
    #allocation6 [shape = 'u8[262144]{0}', space=vmem, size = 0x40000, scoped, tag = 'input window, operand 4, single buffered']
    #allocation7 [shape = 'u8[131072]{0}', space=vmem, size = 0x20000, scoped, tag = 'input window, operand 6, single buffered']
    #allocation8 [shape = 's32[1]{0}', space=sflag, size = 0x4, scoped, tag = 'scoped memory for tpu_custom_call.1']
    %13 = vsyncpa [#allocation3], 0
    %14 = vsyncpa [#allocation5], 0
    %15 = vsyncpa [#allocation8], 0
    // Predicated region
    $region2: #{tpu_custom_call.1} parent=1 // pred_check
      _
    $region3: #{tpu_custom_call.1} parent=1 // pred_check_branch
      %17 = sbr.rel (0) target = $region5
    $region4: #{tpu_custom_call.1} parent=1 // pred_region
      %s19 = ssub.s32 128, 128
      %20 = vsyncadd [#allocation3], %s19
      %s22 = sshll.u32 [#allocation2], 4
      %s23 = int_to_ptr.vmem [resolvable:$true] %s22
      %25 = dma.hbm_to_vmem [thread:$0]  %s0, 128, %s23, [#allocation3]
    $region5: #{tpu_custom_call.1} parent=1 // pred_fallthru
      _
    // Predicated region
    $region6: #{tpu_custom_call.1} parent=1 // pred_check
      _
    $region7: #{tpu_custom_call.1} parent=1 // pred_check_branch
      %27 = sbr.rel (0) target = $region9
    $region8: #{tpu_custom_call.1} parent=1 // pred_region
      _
    $region9: #{tpu_custom_call.1} parent=1 // pred_fallthru
      _
    // Predicated region
    $region10: #{tpu_custom_call.1} parent=1 // pred_check
      _
    $region11: #{tpu_custom_call.1} parent=1 // pred_check_branch
      %29 = sbr.rel (0) target = $region13
    $region12: #{tpu_custom_call.1} parent=1 // pred_region
      %s31 = ssub.s32 4096, 4096
      %32 = vsyncadd [#allocation5], %s31
      %s33 = sshll.u32 [#allocation4], 4
      %s34 = int_to_ptr.vmem [resolvable:$true] %s33
      %39 = dma.hbm_to_vmem [thread:$0]  %s2, 4096, %s34, [#allocation5], 256, 256, 16
    $region13: #{tpu_custom_call.1} parent=1 // pred_fallthru
      _
    // Predicated region
    $region14: #{tpu_custom_call.1} parent=1 // pred_check
      _
    $region15: #{tpu_custom_call.1} parent=1 // pred_check_branch
      %41 = sbr.rel (0) target = $region17
    $region16: #{tpu_custom_call.1} parent=1 // pred_region
      _
    $region17: #{tpu_custom_call.1} parent=1 // pred_fallthru
      _
    // Predicated region
    $region18: #{tpu_custom_call.1} parent=1 // pred_check
      _
    $region19: #{tpu_custom_call.1} parent=1 // pred_check_branch
      %43 = sbr.rel (0) target = $region21
    $region20: #{tpu_custom_call.1} parent=1 // pred_region
      %s45 = ssub.s32 8192, 8192
      %46 = vsyncadd [#allocation5], %s45
      %s47 = sshll.u32 [#allocation6], 4
      %s48 = int_to_ptr.vmem [resolvable:$true] %s47
      %53 = dma.hbm_to_vmem [thread:$0]  %s4, 8192, %s48, [#allocation5], 256, 256, 16
    $region21: #{tpu_custom_call.1} parent=1 // pred_fallthru
      _
    // Predicated region
    $region22: #{tpu_custom_call.1} parent=1 // pred_check
      _
    $region23: #{tpu_custom_call.1} parent=1 // pred_check_branch
      %55 = sbr.rel (0) target = $region25
    $region24: #{tpu_custom_call.1} parent=1 // pred_region
      _
    $region25: #{tpu_custom_call.1} parent=1 // pred_fallthru
      _
    // Predicated region
    $region26: #{tpu_custom_call.1} parent=1 // pred_check
      _
    $region27: #{tpu_custom_call.1} parent=1 // pred_check_branch
      %57 = sbr.rel (0) target = $region29
    $region28: #{tpu_custom_call.1} parent=1 // pred_region
      %s59 = ssub.s32 4096, 4096
      %60 = vsyncadd [#allocation8], %s59
      %s61 = sshll.u32 [#allocation7], 4
      %s62 = int_to_ptr.vmem [resolvable:$true] %s61
      %67 = dma.hbm_to_vmem [thread:$0]  %s6, 4096, %s62, [#allocation8], 128, 128, 8
    $region29: #{tpu_custom_call.1} parent=1 // pred_fallthru
      _
    // Predicated region
    $region30: #{tpu_custom_call.1} parent=1 // pred_check
      _
    $region31: #{tpu_custom_call.1} parent=1 // pred_check_branch
      %69 = sbr.rel (0) target = $region33
    $region32: #{tpu_custom_call.1} parent=1 // pred_region
      _
    $region33: #{tpu_custom_call.1} parent=1 // pred_fallthru
      _
    // Predicated region
    $region34: #{tpu_custom_call.1} parent=1 // pred_check
      _
    $region35: #{tpu_custom_call.1} parent=1 // pred_check_branch
      %71 = sbr.rel (0) target = $region37
    $region36: #{tpu_custom_call.1} parent=1 // pred_region
      %72 = dma.done [#allocation3], 128
    $region37: #{tpu_custom_call.1} parent=1 // pred_fallthru
      _
    // Predicated region
    $region38: #{tpu_custom_call.1} parent=1 // pred_check
      _
    $region39: #{tpu_custom_call.1} parent=1 // pred_check_branch
      %74 = sbr.rel (0) target = $region41
    $region40: #{tpu_custom_call.1} parent=1 // pred_region
      %75 = dma.done [#allocation5], 4096
    $region41: #{tpu_custom_call.1} parent=1 // pred_fallthru
      _
    // Predicated region
    $region42: #{tpu_custom_call.1} parent=1 // pred_check
      _
    $region43: #{tpu_custom_call.1} parent=1 // pred_check_branch
      %77 = sbr.rel (0) target = $region45
    $region44: #{tpu_custom_call.1} parent=1 // pred_region
      %78 = dma.done [#allocation5], 8192
    $region45: #{tpu_custom_call.1} parent=1 // pred_fallthru
      _
    // Predicated region
    $region46: #{tpu_custom_call.1} parent=1 // pred_check
      _
    $region47: #{tpu_custom_call.1} parent=1 // pred_check_branch
      %80 = sbr.rel (0) target = $region49
    $region48: #{tpu_custom_call.1} parent=1 // pred_region
      %81 = dma.done [#allocation8], 4096
    $region49: #{tpu_custom_call.1} parent=1 // pred_fallthru
      _
    %v82 = vld [vmem:[#allocation2] sm:$0xff]
    %v83 = vld [vmem:[%s1] sm:$0x3]
    %v84 = vlaneseq
    %v85 = vshrl.u32 %v84, 7
    %v86 = vsub.s32 0, %v85
    %v87 = vrot.slane %v83, %v86
    %v88 = vsub.f32 %v82, %v87
    %v89 = vlaneseq
    %v90 = vshrl.u32 %v89, 7
    %v91 = vsub.s32 1, %v90
    %v92 = vrot.slane %v83, %v91
    %v93 = vmul.f32 %v88, %v92
    %v94 = vmax.f32 %v93, -5.0
    %v95 = vmin.f32 %v94, 5.0
    %v96 = vld [vmem:[#allocation4] sm:$0xff]
    %v97 = vld [vmem:[#allocation4 + $0x8] sm:$0xff]
    %v98 = vld [vmem:[#allocation4 + $0x10] sm:$0xff]
    %v99 = vld [vmem:[#allocation4 + $0x18] sm:$0xff]
    %v100 = vld [vmem:[#allocation4 + $0x20] sm:$0xff]
    %v101 = vld [vmem:[#allocation4 + $0x28] sm:$0xff]
    %v102 = vld [vmem:[#allocation4 + $0x30] sm:$0xff]
    %v103 = vld [vmem:[#allocation4 + $0x38] sm:$0xff]
    %v104 = vld [vmem:[#allocation4 + $0x40] sm:$0xff]
    %v105 = vld [vmem:[#allocation4 + $0x48] sm:$0xff]
    %v106 = vld [vmem:[#allocation4 + $0x50] sm:$0xff]
    %v107 = vld [vmem:[#allocation4 + $0x58] sm:$0xff]
    %v108 = vld [vmem:[#allocation4 + $0x60] sm:$0xff]
    %v109 = vld [vmem:[#allocation4 + $0x68] sm:$0xff]
    %v110 = vld [vmem:[#allocation4 + $0x70] sm:$0xff]
    %v111 = vld [vmem:[#allocation4 + $0x78] sm:$0xff]
    %v112 = vld [vmem:[#allocation4 + $0x80] sm:$0xff]
    %v113 = vld [vmem:[#allocation4 + $0x88] sm:$0xff]
    %v114 = vld [vmem:[#allocation4 + $0x90] sm:$0xff]
    %v115 = vld [vmem:[#allocation4 + $0x98] sm:$0xff]
    %v116 = vld [vmem:[#allocation4 + $0xa0] sm:$0xff]
    %v117 = vld [vmem:[#allocation4 + $0xa8] sm:$0xff]
    %v118 = vld [vmem:[#allocation4 + $0xb0] sm:$0xff]
    %v119 = vld [vmem:[#allocation4 + $0xb8] sm:$0xff]
    %v120 = vld [vmem:[#allocation4 + $0xc0] sm:$0xff]
    %v121 = vld [vmem:[#allocation4 + $0xc8] sm:$0xff]
    %v122 = vld [vmem:[#allocation4 + $0xd0] sm:$0xff]
    %v123 = vld [vmem:[#allocation4 + $0xd8] sm:$0xff]
    %v124 = vld [vmem:[#allocation4 + $0xe0] sm:$0xff]
    %v125 = vld [vmem:[#allocation4 + $0xe8] sm:$0xff]
    %v126 = vld [vmem:[#allocation4 + $0xf0] sm:$0xff]
    %v127 = vld [vmem:[#allocation4 + $0xf8] sm:$0xff]
    %v128 = vld [vmem:[%s3] sm:$0x3]
    %v130 = vlaneseq
    %v131 = vshrl.u32 %v130, 7
    %v132 = vsub.s32 0, %v131
    %v133 = vrot.slane %v128, %v132
    %v134 = vlaneseq
    %v135 = vshrl.u32 %v134, 7
    %v136 = vsub.s32 1, %v135
    %v137 = vrot.slane %v128, %v136
    %140 = vmatprep.subr.mxu0 %v97
    %141 = vmatpush1.msra.mxu0 %v96
    %142 = vmatprep.subr.mxu0 %v99
    %143 = vmatpush1.msra.mxu0 %v98
    %144 = vmatprep.subr.mxu0 %v101
    %145 = vmatpush1.msra.mxu0 %v100
    %146 = vmatprep.subr.mxu0 %v103
    %147 = vmatpush1.msra.mxu0 %v102
    %148 = vmatprep.subr.mxu0 %v105
    %149 = vmatpush1.msra.mxu0 %v104
    %150 = vmatprep.subr.mxu0 %v107
    %151 = vmatpush1.msra.mxu0 %v106
    %152 = vmatprep.subr.mxu0 %v109
    %153 = vmatpush1.msra.mxu0 %v108
    %154 = vmatprep.subr.mxu0 %v111
    %155 = vmatpush1.msra.mxu0 %v110
    %156 = vmatprep.subr.mxu0 %v113
    %157 = vmatpush1.msra.mxu0 %v112
    %158 = vmatprep.subr.mxu0 %v115
    %159 = vmatpush1.msra.mxu0 %v114
    %160 = vmatprep.subr.mxu0 %v117
    %161 = vmatpush1.msra.mxu0 %v116
    %162 = vmatprep.subr.mxu0 %v119
    %163 = vmatpush1.msra.mxu0 %v118
    %164 = vmatprep.subr.mxu0 %v121
    %165 = vmatpush1.msra.mxu0 %v120
    %166 = vmatprep.subr.mxu0 %v123
    %167 = vmatpush1.msra.mxu0 %v122
    %168 = vmatprep.subr.mxu0 %v125
    %169 = vmatpush1.msra.mxu0 %v124
    %170 = vmatprep.subr.mxu0 %v127
    %171 = vmatpush1.msra.mxu0 %v126
    %172 = vmatprep.subr.mxu0 0.0
    %173 = vmatpush1.msra.mxu0 0.0
    %174 = vmatprep.subr.mxu0 0.0
    %175 = vmatpush1.msra.mxu0 0.0
    %176 = vmatprep.subr.mxu0 0.0
    %177 = vmatpush1.msra.mxu0 0.0
    %178 = vmatprep.subr.mxu0 0.0
    %179 = vmatpush1.msra.mxu0 0.0
    %180 = vmatprep.subr.mxu0 0.0
    %181 = vmatpush1.msra.mxu0 0.0
    %182 = vmatprep.subr.mxu0 0.0
    %183 = vmatpush1.msra.mxu0 0.0
    %184 = vmatprep.subr.mxu0 0.0
    %185 = vmatpush1.msra.mxu0 0.0
    %186 = vmatprep.subr.mxu0 0.0
    %187 = vmatpush1.msra.mxu0 0.0
    %188 = vmatprep.subr.mxu0 0.0
    %189 = vmatpush1.msra.mxu0 0.0
    %190 = vmatprep.subr.mxu0 0.0
    %191 = vmatpush1.msra.mxu0 0.0
    %192 = vmatprep.subr.mxu0 0.0
    %193 = vmatpush1.msra.mxu0 0.0
    %194 = vmatprep.subr.mxu0 0.0
    %195 = vmatpush1.msra.mxu0 0.0
    %196 = vmatprep.subr.mxu0 0.0
    %197 = vmatpush1.msra.mxu0 0.0
    %198 = vmatprep.subr.mxu0 0.0
    %199 = vmatpush1.msra.mxu0 0.0
    %200 = vmatprep.subr.mxu0 0.0
    %201 = vmatpush1.msra.mxu0 0.0
    %202 = vmatprep.subr.mxu0 0.0
    %203 = vmatpush1.msra.mxu0 0.0
    %204 = vmatprep.mubr.f32.mxu0 0.0
    %205 = vmatmul.mubr.f32.gmra.mrb[0].mxu0 %v95
    %v206 = vpop.f32.mrb[0].mxu0
    %v207 = vadd.f32 %v133, %v206
    %v208 = vpop.f32.mrb[0].mxu0
    %v209 = vadd.f32 %v137, %v208
    %210 = vdwg.mxu0
    %v211 = vmax.f32 %v207, 0.0
    %v212 = vmax.f32 %v209, 0.0
    %v213 = vld [vmem:[#allocation6] sm:$0xff]
    %v214 = vld [vmem:[#allocation6 + $0x8] sm:$0xff]
    %v215 = vld [vmem:[#allocation6 + $0x10] sm:$0xff]
    %v216 = vld [vmem:[#allocation6 + $0x18] sm:$0xff]
    %v217 = vld [vmem:[#allocation6 + $0x20] sm:$0xff]
    %v218 = vld [vmem:[#allocation6 + $0x28] sm:$0xff]
    %v219 = vld [vmem:[#allocation6 + $0x30] sm:$0xff]
    %v220 = vld [vmem:[#allocation6 + $0x38] sm:$0xff]
    %v221 = vld [vmem:[#allocation6 + $0x40] sm:$0xff]
    %v222 = vld [vmem:[#allocation6 + $0x48] sm:$0xff]
    %v223 = vld [vmem:[#allocation6 + $0x50] sm:$0xff]
    %v224 = vld [vmem:[#allocation6 + $0x58] sm:$0xff]
    %v225 = vld [vmem:[#allocation6 + $0x60] sm:$0xff]
    %v226 = vld [vmem:[#allocation6 + $0x68] sm:$0xff]
    %v227 = vld [vmem:[#allocation6 + $0x70] sm:$0xff]
    %v228 = vld [vmem:[#allocation6 + $0x78] sm:$0xff]
    %v229 = vld [vmem:[#allocation6 + $0x80] sm:$0xff]
    %v230 = vld [vmem:[#allocation6 + $0x88] sm:$0xff]
    %v231 = vld [vmem:[#allocation6 + $0x90] sm:$0xff]
    %v232 = vld [vmem:[#allocation6 + $0x98] sm:$0xff]
    %v233 = vld [vmem:[#allocation6 + $0xa0] sm:$0xff]
    %v234 = vld [vmem:[#allocation6 + $0xa8] sm:$0xff]
    %v235 = vld [vmem:[#allocation6 + $0xb0] sm:$0xff]
    %v236 = vld [vmem:[#allocation6 + $0xb8] sm:$0xff]
    %v237 = vld [vmem:[#allocation6 + $0xc0] sm:$0xff]
    %v238 = vld [vmem:[#allocation6 + $0xc8] sm:$0xff]
    %v239 = vld [vmem:[#allocation6 + $0xd0] sm:$0xff]
    %v240 = vld [vmem:[#allocation6 + $0xd8] sm:$0xff]
    %v241 = vld [vmem:[#allocation6 + $0xe0] sm:$0xff]
    %v242 = vld [vmem:[#allocation6 + $0xe8] sm:$0xff]
    %v243 = vld [vmem:[#allocation6 + $0xf0] sm:$0xff]
    %v244 = vld [vmem:[#allocation6 + $0xf8] sm:$0xff]
    %v245 = vld [vmem:[#allocation6 + $0x100] sm:$0xff]
    %v246 = vld [vmem:[#allocation6 + $0x108] sm:$0xff]
    %v247 = vld [vmem:[#allocation6 + $0x110] sm:$0xff]
    %v248 = vld [vmem:[#allocation6 + $0x118] sm:$0xff]
    %v249 = vld [vmem:[#allocation6 + $0x120] sm:$0xff]
    %v250 = vld [vmem:[#allocation6 + $0x128] sm:$0xff]
    %v251 = vld [vmem:[#allocation6 + $0x130] sm:$0xff]
    %v252 = vld [vmem:[#allocation6 + $0x138] sm:$0xff]
    %v253 = vld [vmem:[#allocation6 + $0x140] sm:$0xff]
    %v254 = vld [vmem:[#allocation6 + $0x148] sm:$0xff]
    %v255 = vld [vmem:[#allocation6 + $0x150] sm:$0xff]
    %v256 = vld [vmem:[#allocation6 + $0x158] sm:$0xff]
    %v257 = vld [vmem:[#allocation6 + $0x160] sm:$0xff]
    %v258 = vld [vmem:[#allocation6 + $0x168] sm:$0xff]
    %v259 = vld [vmem:[#allocation6 + $0x170] sm:$0xff]
    %v260 = vld [vmem:[#allocation6 + $0x178] sm:$0xff]
    %v261 = vld [vmem:[#allocation6 + $0x180] sm:$0xff]
    %v262 = vld [vmem:[#allocation6 + $0x188] sm:$0xff]
    %v263 = vld [vmem:[#allocation6 + $0x190] sm:$0xff]
    %v264 = vld [vmem:[#allocation6 + $0x198] sm:$0xff]
    %v265 = vld [vmem:[#allocation6 + $0x1a0] sm:$0xff]
    %v266 = vld [vmem:[#allocation6 + $0x1a8] sm:$0xff]
    %v267 = vld [vmem:[#allocation6 + $0x1b0] sm:$0xff]
    %v268 = vld [vmem:[#allocation6 + $0x1b8] sm:$0xff]
    %v269 = vld [vmem:[#allocation6 + $0x1c0] sm:$0xff]
    %v270 = vld [vmem:[#allocation6 + $0x1c8] sm:$0xff]
    %v271 = vld [vmem:[#allocation6 + $0x1d0] sm:$0xff]
    %v272 = vld [vmem:[#allocation6 + $0x1d8] sm:$0xff]
    %v273 = vld [vmem:[#allocation6 + $0x1e0] sm:$0xff]
    %v274 = vld [vmem:[#allocation6 + $0x1e8] sm:$0xff]
    %v275 = vld [vmem:[#allocation6 + $0x1f0] sm:$0xff]
    %v276 = vld [vmem:[#allocation6 + $0x1f8] sm:$0xff]
    %v277 = vld [vmem:[%s5] sm:$0x3]
    %v279 = vlaneseq
    %v280 = vshrl.u32 %v279, 7
    %v281 = vsub.s32 0, %v280
    %v282 = vrot.slane %v277, %v281
    %v283 = vlaneseq
    %v284 = vshrl.u32 %v283, 7
    %v285 = vsub.s32 1, %v284
    %v286 = vrot.slane %v277, %v285
    %289 = vmatprep.subr.mxu0 %v214
    %290 = vmatpush1.msra.mxu0 %v213
    %291 = vmatprep.subr.mxu0 %v216
    %292 = vmatpush1.msra.mxu0 %v215
    %293 = vmatprep.subr.mxu0 %v218
    %294 = vmatpush1.msra.mxu0 %v217
    %295 = vmatprep.subr.mxu0 %v220
    %296 = vmatpush1.msra.mxu0 %v219
    %297 = vmatprep.subr.mxu0 %v222
    %298 = vmatpush1.msra.mxu0 %v221
    %299 = vmatprep.subr.mxu0 %v224
    %300 = vmatpush1.msra.mxu0 %v223
    %301 = vmatprep.subr.mxu0 %v226
    %302 = vmatpush1.msra.mxu0 %v225
    %303 = vmatprep.subr.mxu0 %v228
    %304 = vmatpush1.msra.mxu0 %v227
    %305 = vmatprep.subr.mxu0 %v230
    %306 = vmatpush1.msra.mxu0 %v229
    %307 = vmatprep.subr.mxu0 %v232
    %308 = vmatpush1.msra.mxu0 %v231
    %309 = vmatprep.subr.mxu0 %v234
    %310 = vmatpush1.msra.mxu0 %v233
    %311 = vmatprep.subr.mxu0 %v236
    %312 = vmatpush1.msra.mxu0 %v235
    %313 = vmatprep.subr.mxu0 %v238
    %314 = vmatpush1.msra.mxu0 %v237
    %315 = vmatprep.subr.mxu0 %v240
    %316 = vmatpush1.msra.mxu0 %v239
    %317 = vmatprep.subr.mxu0 %v242
    %318 = vmatpush1.msra.mxu0 %v241
    %319 = vmatprep.subr.mxu0 %v244
    %320 = vmatpush1.msra.mxu0 %v243
    %321 = vmatprep.subr.mxu0 %v246
    %322 = vmatpush1.msra.mxu0 %v245
    %323 = vmatprep.subr.mxu0 %v248
    %324 = vmatpush1.msra.mxu0 %v247
    %325 = vmatprep.subr.mxu0 %v250
    %326 = vmatpush1.msra.mxu0 %v249
    %327 = vmatprep.subr.mxu0 %v252
    %328 = vmatpush1.msra.mxu0 %v251
    %329 = vmatprep.subr.mxu0 %v254
    %330 = vmatpush1.msra.mxu0 %v253
    %331 = vmatprep.subr.mxu0 %v256
    %332 = vmatpush1.msra.mxu0 %v255
    %333 = vmatprep.subr.mxu0 %v258
    %334 = vmatpush1.msra.mxu0 %v257
    %335 = vmatprep.subr.mxu0 %v260
    %336 = vmatpush1.msra.mxu0 %v259
    %337 = vmatprep.subr.mxu0 %v262
    %338 = vmatpush1.msra.mxu0 %v261
    %339 = vmatprep.subr.mxu0 %v264
    %340 = vmatpush1.msra.mxu0 %v263
    %341 = vmatprep.subr.mxu0 %v266
    %342 = vmatpush1.msra.mxu0 %v265
    %343 = vmatprep.subr.mxu0 %v268
    %344 = vmatpush1.msra.mxu0 %v267
    %345 = vmatprep.subr.mxu0 %v270
    %346 = vmatpush1.msra.mxu0 %v269
    %347 = vmatprep.subr.mxu0 %v272
    %348 = vmatpush1.msra.mxu0 %v271
    %349 = vmatprep.subr.mxu0 %v274
    %350 = vmatpush1.msra.mxu0 %v273
    %351 = vmatprep.subr.mxu0 %v276
    %352 = vmatpush1.msra.mxu0 %v275
    %353 = vmatprep.mubr.f32.mxu0 %v212
    %354 = vmatmul.mubr.f32.gmra.mrb[0].mxu0 %v211
    %v355 = vpop.f32.mrb[0].mxu0
    %v356 = vadd.f32 %v282, %v355
    %v357 = vpop.f32.mrb[0].mxu0
    %v358 = vadd.f32 %v286, %v357
    %359 = vdwg.mxu0
    %v360 = vmax.f32 %v356, 0.0
    %v361 = vmax.f32 %v358, 0.0
    %v362 = vld [vmem:[#allocation7] sm:$0xff]
    %v363 = vld [vmem:[#allocation7 + $0x8] sm:$0xff]
    %v364 = vld [vmem:[#allocation7 + $0x10] sm:$0xff]
    %v365 = vld [vmem:[#allocation7 + $0x18] sm:$0xff]
    %v366 = vld [vmem:[#allocation7 + $0x20] sm:$0xff]
    %v367 = vld [vmem:[#allocation7 + $0x28] sm:$0xff]
    %v368 = vld [vmem:[#allocation7 + $0x30] sm:$0xff]
    %v369 = vld [vmem:[#allocation7 + $0x38] sm:$0xff]
    %v370 = vld [vmem:[#allocation7 + $0x40] sm:$0xff]
    %v371 = vld [vmem:[#allocation7 + $0x48] sm:$0xff]
    %v372 = vld [vmem:[#allocation7 + $0x50] sm:$0xff]
    %v373 = vld [vmem:[#allocation7 + $0x58] sm:$0xff]
    %v374 = vld [vmem:[#allocation7 + $0x60] sm:$0xff]
    %v375 = vld [vmem:[#allocation7 + $0x68] sm:$0xff]
    %v376 = vld [vmem:[#allocation7 + $0x70] sm:$0xff]
    %v377 = vld [vmem:[#allocation7 + $0x78] sm:$0xff]
    %v378 = vld [vmem:[#allocation7 + $0x80] sm:$0xff]
    %v379 = vld [vmem:[#allocation7 + $0x88] sm:$0xff]
    %v380 = vld [vmem:[#allocation7 + $0x90] sm:$0xff]
    %v381 = vld [vmem:[#allocation7 + $0x98] sm:$0xff]
    %v382 = vld [vmem:[#allocation7 + $0xa0] sm:$0xff]
    %v383 = vld [vmem:[#allocation7 + $0xa8] sm:$0xff]
    %v384 = vld [vmem:[#allocation7 + $0xb0] sm:$0xff]
    %v385 = vld [vmem:[#allocation7 + $0xb8] sm:$0xff]
    %v386 = vld [vmem:[#allocation7 + $0xc0] sm:$0xff]
    %v387 = vld [vmem:[#allocation7 + $0xc8] sm:$0xff]
    %v388 = vld [vmem:[#allocation7 + $0xd0] sm:$0xff]
    %v389 = vld [vmem:[#allocation7 + $0xd8] sm:$0xff]
    %v390 = vld [vmem:[#allocation7 + $0xe0] sm:$0xff]
    %v391 = vld [vmem:[#allocation7 + $0xe8] sm:$0xff]
    %v392 = vld [vmem:[#allocation7 + $0xf0] sm:$0xff]
    %v393 = vld [vmem:[#allocation7 + $0xf8] sm:$0xff]
    %v394 = vld [vmem:[%s7] sm:$0x1]
    %v396 = vlaneseq
    %v397 = vshrl.u32 %v396, 7
    %v398 = vsub.s32 0, %v397
    %v399 = vrot.slane %v394, %v398
    %401 = vmatprep.subr.mxu0 0.0
    %402 = vmatpush1.msra.mxu0 %v362
    %403 = vmatprep.subr.mxu0 0.0
    %404 = vmatpush1.msra.mxu0 %v363
    %405 = vmatprep.subr.mxu0 0.0
    %406 = vmatpush1.msra.mxu0 %v364
    %407 = vmatprep.subr.mxu0 0.0
    %408 = vmatpush1.msra.mxu0 %v365
    %409 = vmatprep.subr.mxu0 0.0
    %410 = vmatpush1.msra.mxu0 %v366
    %411 = vmatprep.subr.mxu0 0.0
    %412 = vmatpush1.msra.mxu0 %v367
    %413 = vmatprep.subr.mxu0 0.0
    %414 = vmatpush1.msra.mxu0 %v368
    %415 = vmatprep.subr.mxu0 0.0
    %416 = vmatpush1.msra.mxu0 %v369
    %417 = vmatprep.subr.mxu0 0.0
    %418 = vmatpush1.msra.mxu0 %v370
    %419 = vmatprep.subr.mxu0 0.0
    %420 = vmatpush1.msra.mxu0 %v371
    %421 = vmatprep.subr.mxu0 0.0
    %422 = vmatpush1.msra.mxu0 %v372
    %423 = vmatprep.subr.mxu0 0.0
    %424 = vmatpush1.msra.mxu0 %v373
    %425 = vmatprep.subr.mxu0 0.0
    %426 = vmatpush1.msra.mxu0 %v374
    %427 = vmatprep.subr.mxu0 0.0
    %428 = vmatpush1.msra.mxu0 %v375
    %429 = vmatprep.subr.mxu0 0.0
    %430 = vmatpush1.msra.mxu0 %v376
    %431 = vmatprep.subr.mxu0 0.0
    %432 = vmatpush1.msra.mxu0 %v377
    %433 = vmatprep.subr.mxu0 0.0
    %434 = vmatpush1.msra.mxu0 %v378
    %435 = vmatprep.subr.mxu0 0.0
    %436 = vmatpush1.msra.mxu0 %v379
    %437 = vmatprep.subr.mxu0 0.0
    %438 = vmatpush1.msra.mxu0 %v380
    %439 = vmatprep.subr.mxu0 0.0
    %440 = vmatpush1.msra.mxu0 %v381
    %441 = vmatprep.subr.mxu0 0.0
    %442 = vmatpush1.msra.mxu0 %v382
    %443 = vmatprep.subr.mxu0 0.0
    %444 = vmatpush1.msra.mxu0 %v383
    %445 = vmatprep.subr.mxu0 0.0
    %446 = vmatpush1.msra.mxu0 %v384
    %447 = vmatprep.subr.mxu0 0.0
    %448 = vmatpush1.msra.mxu0 %v385
    %449 = vmatprep.subr.mxu0 0.0
    %450 = vmatpush1.msra.mxu0 %v386
    %451 = vmatprep.subr.mxu0 0.0
    %452 = vmatpush1.msra.mxu0 %v387
    %453 = vmatprep.subr.mxu0 0.0
    %454 = vmatpush1.msra.mxu0 %v388
    %455 = vmatprep.subr.mxu0 0.0
    %456 = vmatpush1.msra.mxu0 %v389
    %457 = vmatprep.subr.mxu0 0.0
    %458 = vmatpush1.msra.mxu0 %v390
    %459 = vmatprep.subr.mxu0 0.0
    %460 = vmatpush1.msra.mxu0 %v391
    %461 = vmatprep.subr.mxu0 0.0
    %462 = vmatpush1.msra.mxu0 %v392
    %463 = vmatprep.subr.mxu0 0.0
    %464 = vmatpush1.msra.mxu0 %v393
    %465 = vmatprep.mubr.f32.mxu0 %v361
    %466 = vmatmul.mubr.f32.gmra.mrb[0].mxu0 %v360
    %v467 = vpop.f32.mrb[0].mxu0
    %v468 = vadd.f32 %v399, %v467
    %v469 = vpop.f32.mrb[0].mxu0
    %470 = vdwg.mxu0
    %v471 = vmul.f32 %v468, %v468
    %472 = vadd.xlane.f32.xlu0 %v471
    %v473 = vpop.xlane.xlu0 %472
    %v474 = vmul.f32 %v473, 0.0625
    %vm475 = vcmask 7168
    %476 = vst.msk [vmem:[%s8] sm:$0xff] %vm475, %v474
    // Predicated region
    $region50: #{tpu_custom_call.1} parent=1 // pred_check
      _
    $region51: #{tpu_custom_call.1} parent=1 // pred_check_branch
      %478 = sbr.rel (0) target = $region53
    $region52: #{tpu_custom_call.1} parent=1 // pred_region
      _
    $region53: #{tpu_custom_call.1} parent=1 // pred_fallthru
      _
    // Predicated region
    $region54: #{tpu_custom_call.1} parent=1 // pred_check
      _
    $region55: #{tpu_custom_call.1} parent=1 // pred_check_branch
      %480 = sbr.rel (0) target = $region57
    $region56: #{tpu_custom_call.1} parent=1 // pred_region
      _
    $region57: #{tpu_custom_call.1} parent=1 // pred_fallthru
      _
    %481 = vsyncpa [#allocation3], 1
    %482 = vsyncpa [#allocation5], 1
    %483 = vsyncpa [#allocation8], 1

// kernel: tpu_custom_call.1
$region0: #{tpu_custom_call.1}
  #allocation0 [shape = 'u32[]', space=smem, size = 0x4, offset = 0x4, fixed_abs, tag = 'smem constant byte address 0x4 - core index']
  #allocation1 [shape = 'u32[144,128]{1,0:T(1,128)}', space=vmem, size = 0x12000, scoped, tag = 'internal scratch']
  %s0 = inlined_call_operand.hbm [shape: f32[8,128], index: 0, kind: input, shape index: {}]
  %s1 = inlined_call_operand.vmem [shape: f32[2,128], index: 1, kind: input, shape index: {}]
  %s2 = inlined_call_operand.hbm [shape: f32[128,256], index: 2, kind: input, shape index: {}]
  %s3 = inlined_call_operand.vmem [shape: f32[1,256], index: 3, kind: input, shape index: {}]
  %s4 = inlined_call_operand.hbm [shape: f32[256,256], index: 4, kind: input, shape index: {}]
  %s5 = inlined_call_operand.vmem [shape: f32[1,256], index: 5, kind: input, shape index: {}]
  %s6 = inlined_call_operand.hbm [shape: f32[256,128], index: 6, kind: input, shape index: {}]
  %s7 = inlined_call_operand.vmem [shape: f32[1,128], index: 7, kind: input, shape index: {}]
  %s8 = inlined_call_operand.vmem [shape: f32[8,1], index: 8, kind: output, shape index: {}]
  %s9 = sld [smem:[#allocation0]]
  $region58: #{tpu_custom_call.1} parent=0
    _
  %s11 = ssub.s32 1, %s9
  %s12 = scalar_select 0, %s11, %s9
  $region1: #{tpu_custom_call.1} parent=0
    #allocation2 [shape = 'u8[4096]{0}', space=vmem, size = 0x1000, scoped, tag = 'input window, operand 0, single buffered']
    #allocation3 [shape = 's32[1]{0}', space=sflag, size = 0x4, scoped, tag = 'scoped memory for tpu_custom_call.1']
    #allocation4 [shape = 'u8[131072]{0}', space=vmem, size = 0x20000, scoped, tag = 'input window, operand 2, single buffered']
    #allocation5 [shape = 's32[1]{0}', space=sflag, size = 0x4, scoped, tag = 'scoped memory for tpu_custom_call.1']
    #allocation6 [shape = 'u8[262144]{0}', space=vmem, size = 0x40000, scoped, tag = 'input window, operand 4, single buffered']
    #allocation7 [shape = 'u8[131072]{0}', space=vmem, size = 0x20000, scoped, tag = 'input window, operand 6, single buffered']
    #allocation8 [shape = 's32[1]{0}', space=sflag, size = 0x4, scoped, tag = 'scoped memory for tpu_custom_call.1']
    %13 = vsyncpa [#allocation3], 0
    %14 = vsyncpa [#allocation5], 0
    %15 = vsyncpa [#allocation8], 0
    // Predicated region
    $region2: #{tpu_custom_call.1} parent=1 // pred_check
      _
    $region3: #{tpu_custom_call.1} parent=1 // pred_check_branch
      %17 = sbr.rel (0) target = $region5
    $region4: #{tpu_custom_call.1} parent=1 // pred_region
      %s19 = ssub.s32 128, 128
      %20 = vsyncadd [#allocation3], %s19
      %s22 = sshll.u32 [#allocation2], 4
      %s23 = int_to_ptr.vmem [resolvable:$true] %s22
      %25 = dma.hbm_to_vmem [thread:$0]  %s0, 128, %s23, [#allocation3]
    $region5: #{tpu_custom_call.1} parent=1 // pred_fallthru
      _
    // Predicated region
    $region6: #{tpu_custom_call.1} parent=1 // pred_check
      _
    $region7: #{tpu_custom_call.1} parent=1 // pred_check_branch
      %27 = sbr.rel (0) target = $region9
    $region8: #{tpu_custom_call.1} parent=1 // pred_region
      _
    $region9: #{tpu_custom_call.1} parent=1 // pred_fallthru
      _
    // Predicated region
    $region10: #{tpu_custom_call.1} parent=1 // pred_check
      _
    $region11: #{tpu_custom_call.1} parent=1 // pred_check_branch
      %29 = sbr.rel (0) target = $region13
    $region12: #{tpu_custom_call.1} parent=1 // pred_region
      %s31 = ssub.s32 4096, 4096
      %32 = vsyncadd [#allocation5], %s31
      %s33 = sshll.u32 [#allocation4], 4
      %s34 = int_to_ptr.vmem [resolvable:$true] %s33
      %39 = dma.hbm_to_vmem [thread:$0]  %s2, 4096, %s34, [#allocation5], 256, 256, 16
    $region13: #{tpu_custom_call.1} parent=1 // pred_fallthru
      _
    // Predicated region
    $region14: #{tpu_custom_call.1} parent=1 // pred_check
      _
    $region15: #{tpu_custom_call.1} parent=1 // pred_check_branch
      %41 = sbr.rel (0) target = $region17
    $region16: #{tpu_custom_call.1} parent=1 // pred_region
      _
    $region17: #{tpu_custom_call.1} parent=1 // pred_fallthru
      _
    // Predicated region
    $region18: #{tpu_custom_call.1} parent=1 // pred_check
      _
    $region19: #{tpu_custom_call.1} parent=1 // pred_check_branch
      %43 = sbr.rel (0) target = $region21
    $region20: #{tpu_custom_call.1} parent=1 // pred_region
      %s45 = ssub.s32 8192, 8192
      %46 = vsyncadd [#allocation5], %s45
      %s47 = sshll.u32 [#allocation6], 4
      %s48 = int_to_ptr.vmem [resolvable:$true] %s47
      %53 = dma.hbm_to_vmem [thread:$0]  %s4, 8192, %s48, [#allocation5], 256, 256, 16
    $region21: #{tpu_custom_call.1} parent=1 // pred_fallthru
      _
    // Predicated region
    $region22: #{tpu_custom_call.1} parent=1 // pred_check
      _
    $region23: #{tpu_custom_call.1} parent=1 // pred_check_branch
      %55 = sbr.rel (0) target = $region25
    $region24: #{tpu_custom_call.1} parent=1 // pred_region
      _
    $region25: #{tpu_custom_call.1} parent=1 // pred_fallthru
      _
    // Predicated region
    $region26: #{tpu_custom_call.1} parent=1 // pred_check
      _
    $region27: #{tpu_custom_call.1} parent=1 // pred_check_branch
      %57 = sbr.rel (0) target = $region29
    $region28: #{tpu_custom_call.1} parent=1 // pred_region
      %s59 = ssub.s32 4096, 4096
      %60 = vsyncadd [#allocation8], %s59
      %s61 = sshll.u32 [#allocation7], 4
      %s62 = int_to_ptr.vmem [resolvable:$true] %s61
      %67 = dma.hbm_to_vmem [thread:$0]  %s6, 4096, %s62, [#allocation8], 128, 128, 8
    $region29: #{tpu_custom_call.1} parent=1 // pred_fallthru
      _
    // Predicated region
    $region30: #{tpu_custom_call.1} parent=1 // pred_check
      _
    $region31: #{tpu_custom_call.1} parent=1 // pred_check_branch
      %69 = sbr.rel (0) target = $region33
    $region32: #{tpu_custom_call.1} parent=1 // pred_region
      _
    $region33: #{tpu_custom_call.1} parent=1 // pred_fallthru
      _
    // Predicated region
    $region34: #{tpu_custom_call.1} parent=1 // pred_check
      _
    $region35: #{tpu_custom_call.1} parent=1 // pred_check_branch
      %71 = sbr.rel (0) target = $region37
    $region36: #{tpu_custom_call.1} parent=1 // pred_region
      %72 = dma.done [#allocation3], 128
    $region37: #{tpu_custom_call.1} parent=1 // pred_fallthru
      _
    // Predicated region
    $region38: #{tpu_custom_call.1} parent=1 // pred_check
      _
    $region39: #{tpu_custom_call.1} parent=1 // pred_check_branch
      %74 = sbr.rel (0) target = $region41
    $region40: #{tpu_custom_call.1} parent=1 // pred_region
      %75 = dma.done [#allocation5], 4096
    $region41: #{tpu_custom_call.1} parent=1 // pred_fallthru
      _
    // Predicated region
    $region42: #{tpu_custom_call.1} parent=1 // pred_check
      _
    $region43: #{tpu_custom_call.1} parent=1 // pred_check_branch
      %77 = sbr.rel (0) target = $region45
    $region44: #{tpu_custom_call.1} parent=1 // pred_region
      %78 = dma.done [#allocation5], 8192
    $region45: #{tpu_custom_call.1} parent=1 // pred_fallthru
      _
    // Predicated region
    $region46: #{tpu_custom_call.1} parent=1 // pred_check
      _
    $region47: #{tpu_custom_call.1} parent=1 // pred_check_branch
      %80 = sbr.rel (0) target = $region49
    $region48: #{tpu_custom_call.1} parent=1 // pred_region
      %81 = dma.done [#allocation8], 4096
    $region49: #{tpu_custom_call.1} parent=1 // pred_fallthru
      _
    %v82 = vld [vmem:[#allocation2] sm:$0xff]
    %v83 = vld [vmem:[%s1] sm:$0x3]
    %v84 = vlaneseq
    %v85 = vshrl.u32 %v84, 7
    %v86 = vsub.s32 0, %v85
    %v87 = vrot.slane %v83, %v86
    %v88 = vsub.f32 %v82, %v87
    %v89 = vlaneseq
    %v90 = vshrl.u32 %v89, 7
    %v91 = vsub.s32 1, %v90
    %v92 = vrot.slane %v83, %v91
    %v93 = vmul.f32 %v88, %v92
    %v94 = vmax.f32 %v93, -5.0
    %v95 = vmin.f32 %v94, 5.0
    %v96 = vld [vmem:[#allocation4] sm:$0xff]
    %v97 = vld [vmem:[#allocation4 + $0x8] sm:$0xff]
    %v98 = vld [vmem:[#allocation4 + $0x10] sm:$0xff]
    %v99 = vld [vmem:[#allocation4 + $0x18] sm:$0xff]
    %v100 = vld [vmem:[#allocation4 + $0x20] sm:$0xff]
    %v101 = vld [vmem:[#allocation4 + $0x28] sm:$0xff]
    %v102 = vld [vmem:[#allocation4 + $0x30] sm:$0xff]
    %v103 = vld [vmem:[#allocation4 + $0x38] sm:$0xff]
    %v104 = vld [vmem:[#allocation4 + $0x40] sm:$0xff]
    %v105 = vld [vmem:[#allocation4 + $0x48] sm:$0xff]
    %v106 = vld [vmem:[#allocation4 + $0x50] sm:$0xff]
    %v107 = vld [vmem:[#allocation4 + $0x58] sm:$0xff]
    %v108 = vld [vmem:[#allocation4 + $0x60] sm:$0xff]
    %v109 = vld [vmem:[#allocation4 + $0x68] sm:$0xff]
    %v110 = vld [vmem:[#allocation4 + $0x70] sm:$0xff]
    %v111 = vld [vmem:[#allocation4 + $0x78] sm:$0xff]
    %v112 = vld [vmem:[#allocation4 + $0x80] sm:$0xff]
    %v113 = vld [vmem:[#allocation4 + $0x88] sm:$0xff]
    %v114 = vld [vmem:[#allocation4 + $0x90] sm:$0xff]
    %v115 = vld [vmem:[#allocation4 + $0x98] sm:$0xff]
    %v116 = vld [vmem:[#allocation4 + $0xa0] sm:$0xff]
    %v117 = vld [vmem:[#allocation4 + $0xa8] sm:$0xff]
    %v118 = vld [vmem:[#allocation4 + $0xb0] sm:$0xff]
    %v119 = vld [vmem:[#allocation4 + $0xb8] sm:$0xff]
    %v120 = vld [vmem:[#allocation4 + $0xc0] sm:$0xff]
    %v121 = vld [vmem:[#allocation4 + $0xc8] sm:$0xff]
    %v122 = vld [vmem:[#allocation4 + $0xd0] sm:$0xff]
    %v123 = vld [vmem:[#allocation4 + $0xd8] sm:$0xff]
    %v124 = vld [vmem:[#allocation4 + $0xe0] sm:$0xff]
    %v125 = vld [vmem:[#allocation4 + $0xe8] sm:$0xff]
    %v126 = vld [vmem:[#allocation4 + $0xf0] sm:$0xff]
    %v127 = vld [vmem:[#allocation4 + $0xf8] sm:$0xff]
    %v128 = vld [vmem:[%s3] sm:$0x3]
    %v130 = vlaneseq
    %v131 = vshrl.u32 %v130, 7
    %v132 = vsub.s32 0, %v131
    %v133 = vrot.slane %v128, %v132
    %v134 = vlaneseq
    %v135 = vshrl.u32 %v134, 7
    %v136 = vsub.s32 1, %v135
    %v137 = vrot.slane %v128, %v136
    %140 = vmatprep.subr.mxu0 %v97
    %141 = vmatpush1.msra.mxu0 %v96
    %142 = vmatprep.subr.mxu0 %v99
    %143 = vmatpush1.msra.mxu0 %v98
    %144 = vmatprep.subr.mxu0 %v101
    %145 = vmatpush1.msra.mxu0 %v100
    %146 = vmatprep.subr.mxu0 %v103
    %147 = vmatpush1.msra.mxu0 %v102
    %148 = vmatprep.subr.mxu0 %v105
    %149 = vmatpush1.msra.mxu0 %v104
    %150 = vmatprep.subr.mxu0 %v107
    %151 = vmatpush1.msra.mxu0 %v106
    %152 = vmatprep.subr.mxu0 %v109
    %153 = vmatpush1.msra.mxu0 %v108
    %154 = vmatprep.subr.mxu0 %v111
    %155 = vmatpush1.msra.mxu0 %v110
    %156 = vmatprep.subr.mxu0 %v113
    %157 = vmatpush1.msra.mxu0 %v112
    %158 = vmatprep.subr.mxu0 %v115
    %159 = vmatpush1.msra.mxu0 %v114
    %160 = vmatprep.subr.mxu0 %v117
    %161 = vmatpush1.msra.mxu0 %v116
    %162 = vmatprep.subr.mxu0 %v119
    %163 = vmatpush1.msra.mxu0 %v118
    %164 = vmatprep.subr.mxu0 %v121
    %165 = vmatpush1.msra.mxu0 %v120
    %166 = vmatprep.subr.mxu0 %v123
    %167 = vmatpush1.msra.mxu0 %v122
    %168 = vmatprep.subr.mxu0 %v125
    %169 = vmatpush1.msra.mxu0 %v124
    %170 = vmatprep.subr.mxu0 %v127
    %171 = vmatpush1.msra.mxu0 %v126
    %172 = vmatprep.subr.mxu0 0.0
    %173 = vmatpush1.msra.mxu0 0.0
    %174 = vmatprep.subr.mxu0 0.0
    %175 = vmatpush1.msra.mxu0 0.0
    %176 = vmatprep.subr.mxu0 0.0
    %177 = vmatpush1.msra.mxu0 0.0
    %178 = vmatprep.subr.mxu0 0.0
    %179 = vmatpush1.msra.mxu0 0.0
    %180 = vmatprep.subr.mxu0 0.0
    %181 = vmatpush1.msra.mxu0 0.0
    %182 = vmatprep.subr.mxu0 0.0
    %183 = vmatpush1.msra.mxu0 0.0
    %184 = vmatprep.subr.mxu0 0.0
    %185 = vmatpush1.msra.mxu0 0.0
    %186 = vmatprep.subr.mxu0 0.0
    %187 = vmatpush1.msra.mxu0 0.0
    %188 = vmatprep.subr.mxu0 0.0
    %189 = vmatpush1.msra.mxu0 0.0
    %190 = vmatprep.subr.mxu0 0.0
    %191 = vmatpush1.msra.mxu0 0.0
    %192 = vmatprep.subr.mxu0 0.0
    %193 = vmatpush1.msra.mxu0 0.0
    %194 = vmatprep.subr.mxu0 0.0
    %195 = vmatpush1.msra.mxu0 0.0
    %196 = vmatprep.subr.mxu0 0.0
    %197 = vmatpush1.msra.mxu0 0.0
    %198 = vmatprep.subr.mxu0 0.0
    %199 = vmatpush1.msra.mxu0 0.0
    %200 = vmatprep.subr.mxu0 0.0
    %201 = vmatpush1.msra.mxu0 0.0
    %202 = vmatprep.subr.mxu0 0.0
    %203 = vmatpush1.msra.mxu0 0.0
    %204 = vmatprep.mubr.f32.mxu0 0.0
    %205 = vmatmul.mubr.f32.gmra.mrb[0].mxu0 %v95
    %v206 = vpop.f32.mrb[0].mxu0
    %v207 = vadd.f32 %v133, %v206
    %v208 = vpop.f32.mrb[0].mxu0
    %v209 = vadd.f32 %v137, %v208
    %210 = vdwg.mxu0
    %v211 = vmax.f32 %v207, 0.0
    %v212 = vmax.f32 %v209, 0.0
    %v213 = vld [vmem:[#allocation6] sm:$0xff]
    %v214 = vld [vmem:[#allocation6 + $0x8] sm:$0xff]
    %v215 = vld [vmem:[#allocation6 + $0x10] sm:$0xff]
    %v216 = vld [vmem:[#allocation6 + $0x18] sm:$0xff]
    %v217 = vld [vmem:[#allocation6 + $0x20] sm:$0xff]
    %v218 = vld [vmem:[#allocation6 + $0x28] sm:$0xff]
    %v219 = vld [vmem:[#allocation6 + $0x30] sm:$0xff]
    %v220 = vld [vmem:[#allocation6 + $0x38] sm:$0xff]
    %v221 = vld [vmem:[#allocation6 + $0x40] sm:$0xff]
    %v222 = vld [vmem:[#allocation6 + $0x48] sm:$0xff]
    %v223 = vld [vmem:[#allocation6 + $0x50] sm:$0xff]
    %v224 = vld [vmem:[#allocation6 + $0x58] sm:$0xff]
    %v225 = vld [vmem:[#allocation6 + $0x60] sm:$0xff]
    %v226 = vld [vmem:[#allocation6 + $0x68] sm:$0xff]
    %v227 = vld [vmem:[#allocation6 + $0x70] sm:$0xff]
    %v228 = vld [vmem:[#allocation6 + $0x78] sm:$0xff]
    %v229 = vld [vmem:[#allocation6 + $0x80] sm:$0xff]
    %v230 = vld [vmem:[#allocation6 + $0x88] sm:$0xff]
    %v231 = vld [vmem:[#allocation6 + $0x90] sm:$0xff]
    %v232 = vld [vmem:[#allocation6 + $0x98] sm:$0xff]
    %v233 = vld [vmem:[#allocation6 + $0xa0] sm:$0xff]
    %v234 = vld [vmem:[#allocation6 + $0xa8] sm:$0xff]
    %v235 = vld [vmem:[#allocation6 + $0xb0] sm:$0xff]
    %v236 = vld [vmem:[#allocation6 + $0xb8] sm:$0xff]
    %v237 = vld [vmem:[#allocation6 + $0xc0] sm:$0xff]
    %v238 = vld [vmem:[#allocation6 + $0xc8] sm:$0xff]
    %v239 = vld [vmem:[#allocation6 + $0xd0] sm:$0xff]
    %v240 = vld [vmem:[#allocation6 + $0xd8] sm:$0xff]
    %v241 = vld [vmem:[#allocation6 + $0xe0] sm:$0xff]
    %v242 = vld [vmem:[#allocation6 + $0xe8] sm:$0xff]
    %v243 = vld [vmem:[#allocation6 + $0xf0] sm:$0xff]
    %v244 = vld [vmem:[#allocation6 + $0xf8] sm:$0xff]
    %v245 = vld [vmem:[#allocation6 + $0x100] sm:$0xff]
    %v246 = vld [vmem:[#allocation6 + $0x108] sm:$0xff]
    %v247 = vld [vmem:[#allocation6 + $0x110] sm:$0xff]
    %v248 = vld [vmem:[#allocation6 + $0x118] sm:$0xff]
    %v249 = vld [vmem:[#allocation6 + $0x120] sm:$0xff]
    %v250 = vld [vmem:[#allocation6 + $0x128] sm:$0xff]
    %v251 = vld [vmem:[#allocation6 + $0x130] sm:$0xff]
    %v252 = vld [vmem:[#allocation6 + $0x138] sm:$0xff]
    %v253 = vld [vmem:[#allocation6 + $0x140] sm:$0xff]
    %v254 = vld [vmem:[#allocation6 + $0x148] sm:$0xff]
    %v255 = vld [vmem:[#allocation6 + $0x150] sm:$0xff]
    %v256 = vld [vmem:[#allocation6 + $0x158] sm:$0xff]
    %v257 = vld [vmem:[#allocation6 + $0x160] sm:$0xff]
    %v258 = vld [vmem:[#allocation6 + $0x168] sm:$0xff]
    %v259 = vld [vmem:[#allocation6 + $0x170] sm:$0xff]
    %v260 = vld [vmem:[#allocation6 + $0x178] sm:$0xff]
    %v261 = vld [vmem:[#allocation6 + $0x180] sm:$0xff]
    %v262 = vld [vmem:[#allocation6 + $0x188] sm:$0xff]
    %v263 = vld [vmem:[#allocation6 + $0x190] sm:$0xff]
    %v264 = vld [vmem:[#allocation6 + $0x198] sm:$0xff]
    %v265 = vld [vmem:[#allocation6 + $0x1a0] sm:$0xff]
    %v266 = vld [vmem:[#allocation6 + $0x1a8] sm:$0xff]
    %v267 = vld [vmem:[#allocation6 + $0x1b0] sm:$0xff]
    %v268 = vld [vmem:[#allocation6 + $0x1b8] sm:$0xff]
    %v269 = vld [vmem:[#allocation6 + $0x1c0] sm:$0xff]
    %v270 = vld [vmem:[#allocation6 + $0x1c8] sm:$0xff]
    %v271 = vld [vmem:[#allocation6 + $0x1d0] sm:$0xff]
    %v272 = vld [vmem:[#allocation6 + $0x1d8] sm:$0xff]
    %v273 = vld [vmem:[#allocation6 + $0x1e0] sm:$0xff]
    %v274 = vld [vmem:[#allocation6 + $0x1e8] sm:$0xff]
    %v275 = vld [vmem:[#allocation6 + $0x1f0] sm:$0xff]
    %v276 = vld [vmem:[#allocation6 + $0x1f8] sm:$0xff]
    %v277 = vld [vmem:[%s5] sm:$0x3]
    %v279 = vlaneseq
    %v280 = vshrl.u32 %v279, 7
    %v281 = vsub.s32 0, %v280
    %v282 = vrot.slane %v277, %v281
    %v283 = vlaneseq
    %v284 = vshrl.u32 %v283, 7
    %v285 = vsub.s32 1, %v284
    %v286 = vrot.slane %v277, %v285
    %289 = vmatprep.subr.mxu0 %v214
    %290 = vmatpush1.msra.mxu0 %v213
    %291 = vmatprep.subr.mxu0 %v216
    %292 = vmatpush1.msra.mxu0 %v215
    %293 = vmatprep.subr.mxu0 %v218
    %294 = vmatpush1.msra.mxu0 %v217
    %295 = vmatprep.subr.mxu0 %v220
    %296 = vmatpush1.msra.mxu0 %v219
    %297 = vmatprep.subr.mxu0 %v222
    %298 = vmatpush1.msra.mxu0 %v221
    %299 = vmatprep.subr.mxu0 %v224
    %300 = vmatpush1.msra.mxu0 %v223
    %301 = vmatprep.subr.mxu0 %v226
    %302 = vmatpush1.msra.mxu0 %v225
    %303 = vmatprep.subr.mxu0 %v228
    %304 = vmatpush1.msra.mxu0 %v227
    %305 = vmatprep.subr.mxu0 %v230
    %306 = vmatpush1.msra.mxu0 %v229
    %307 = vmatprep.subr.mxu0 %v232
    %308 = vmatpush1.msra.mxu0 %v231
    %309 = vmatprep.subr.mxu0 %v234
    %310 = vmatpush1.msra.mxu0 %v233
    %311 = vmatprep.subr.mxu0 %v236
    %312 = vmatpush1.msra.mxu0 %v235
    %313 = vmatprep.subr.mxu0 %v238
    %314 = vmatpush1.msra.mxu0 %v237
    %315 = vmatprep.subr.mxu0 %v240
    %316 = vmatpush1.msra.mxu0 %v239
    %317 = vmatprep.subr.mxu0 %v242
    %318 = vmatpush1.msra.mxu0 %v241
    %319 = vmatprep.subr.mxu0 %v244
    %320 = vmatpush1.msra.mxu0 %v243
    %321 = vmatprep.subr.mxu0 %v246
    %322 = vmatpush1.msra.mxu0 %v245
    %323 = vmatprep.subr.mxu0 %v248
    %324 = vmatpush1.msra.mxu0 %v247
    %325 = vmatprep.subr.mxu0 %v250
    %326 = vmatpush1.msra.mxu0 %v249
    %327 = vmatprep.subr.mxu0 %v252
    %328 = vmatpush1.msra.mxu0 %v251
    %329 = vmatprep.subr.mxu0 %v254
    %330 = vmatpush1.msra.mxu0 %v253
    %331 = vmatprep.subr.mxu0 %v256
    %332 = vmatpush1.msra.mxu0 %v255
    %333 = vmatprep.subr.mxu0 %v258
    %334 = vmatpush1.msra.mxu0 %v257
    %335 = vmatprep.subr.mxu0 %v260
    %336 = vmatpush1.msra.mxu0 %v259
    %337 = vmatprep.subr.mxu0 %v262
    %338 = vmatpush1.msra.mxu0 %v261
    %339 = vmatprep.subr.mxu0 %v264
    %340 = vmatpush1.msra.mxu0 %v263
    %341 = vmatprep.subr.mxu0 %v266
    %342 = vmatpush1.msra.mxu0 %v265
    %343 = vmatprep.subr.mxu0 %v268
    %344 = vmatpush1.msra.mxu0 %v267
    %345 = vmatprep.subr.mxu0 %v270
    %346 = vmatpush1.msra.mxu0 %v269
    %347 = vmatprep.subr.mxu0 %v272
    %348 = vmatpush1.msra.mxu0 %v271
    %349 = vmatprep.subr.mxu0 %v274
    %350 = vmatpush1.msra.mxu0 %v273
    %351 = vmatprep.subr.mxu0 %v276
    %352 = vmatpush1.msra.mxu0 %v275
    %353 = vmatprep.mubr.f32.mxu0 %v212
    %354 = vmatmul.mubr.f32.gmra.mrb[0].mxu0 %v211
    %v355 = vpop.f32.mrb[0].mxu0
    %v356 = vadd.f32 %v282, %v355
    %v357 = vpop.f32.mrb[0].mxu0
    %v358 = vadd.f32 %v286, %v357
    %359 = vdwg.mxu0
    %v360 = vmax.f32 %v356, 0.0
    %v361 = vmax.f32 %v358, 0.0
    %v362 = vld [vmem:[#allocation7] sm:$0xff]
    %v363 = vld [vmem:[#allocation7 + $0x8] sm:$0xff]
    %v364 = vld [vmem:[#allocation7 + $0x10] sm:$0xff]
    %v365 = vld [vmem:[#allocation7 + $0x18] sm:$0xff]
    %v366 = vld [vmem:[#allocation7 + $0x20] sm:$0xff]
    %v367 = vld [vmem:[#allocation7 + $0x28] sm:$0xff]
    %v368 = vld [vmem:[#allocation7 + $0x30] sm:$0xff]
    %v369 = vld [vmem:[#allocation7 + $0x38] sm:$0xff]
    %v370 = vld [vmem:[#allocation7 + $0x40] sm:$0xff]
    %v371 = vld [vmem:[#allocation7 + $0x48] sm:$0xff]
    %v372 = vld [vmem:[#allocation7 + $0x50] sm:$0xff]
    %v373 = vld [vmem:[#allocation7 + $0x58] sm:$0xff]
    %v374 = vld [vmem:[#allocation7 + $0x60] sm:$0xff]
    %v375 = vld [vmem:[#allocation7 + $0x68] sm:$0xff]
    %v376 = vld [vmem:[#allocation7 + $0x70] sm:$0xff]
    %v377 = vld [vmem:[#allocation7 + $0x78] sm:$0xff]
    %v378 = vld [vmem:[#allocation7 + $0x80] sm:$0xff]
    %v379 = vld [vmem:[#allocation7 + $0x88] sm:$0xff]
    %v380 = vld [vmem:[#allocation7 + $0x90] sm:$0xff]
    %v381 = vld [vmem:[#allocation7 + $0x98] sm:$0xff]
    %v382 = vld [vmem:[#allocation7 + $0xa0] sm:$0xff]
    %v383 = vld [vmem:[#allocation7 + $0xa8] sm:$0xff]
    %v384 = vld [vmem:[#allocation7 + $0xb0] sm:$0xff]
    %v385 = vld [vmem:[#allocation7 + $0xb8] sm:$0xff]
    %v386 = vld [vmem:[#allocation7 + $0xc0] sm:$0xff]
    %v387 = vld [vmem:[#allocation7 + $0xc8] sm:$0xff]
    %v388 = vld [vmem:[#allocation7 + $0xd0] sm:$0xff]
    %v389 = vld [vmem:[#allocation7 + $0xd8] sm:$0xff]
    %v390 = vld [vmem:[#allocation7 + $0xe0] sm:$0xff]
    %v391 = vld [vmem:[#allocation7 + $0xe8] sm:$0xff]
    %v392 = vld [vmem:[#allocation7 + $0xf0] sm:$0xff]
    %v393 = vld [vmem:[#allocation7 + $0xf8] sm:$0xff]
    %v394 = vld [vmem:[%s7] sm:$0x1]
    %v396 = vlaneseq
    %v397 = vshrl.u32 %v396, 7
    %v398 = vsub.s32 0, %v397
    %v399 = vrot.slane %v394, %v398
    %401 = vmatprep.subr.mxu0 0.0
    %402 = vmatpush1.msra.mxu0 %v362
    %403 = vmatprep.subr.mxu0 0.0
    %404 = vmatpush1.msra.mxu0 %v363
    %405 = vmatprep.subr.mxu0 0.0
    %406 = vmatpush1.msra.mxu0 %v364
    %407 = vmatprep.subr.mxu0 0.0
    %408 = vmatpush1.msra.mxu0 %v365
    %409 = vmatprep.subr.mxu0 0.0
    %410 = vmatpush1.msra.mxu0 %v366
    %411 = vmatprep.subr.mxu0 0.0
    %412 = vmatpush1.msra.mxu0 %v367
    %413 = vmatprep.subr.mxu0 0.0
    %414 = vmatpush1.msra.mxu0 %v368
    %415 = vmatprep.subr.mxu0 0.0
    %416 = vmatpush1.msra.mxu0 %v369
    %417 = vmatprep.subr.mxu0 0.0
    %418 = vmatpush1.msra.mxu0 %v370
    %419 = vmatprep.subr.mxu0 0.0
    %420 = vmatpush1.msra.mxu0 %v371
    %421 = vmatprep.subr.mxu0 0.0
    %422 = vmatpush1.msra.mxu0 %v372
    %423 = vmatprep.subr.mxu0 0.0
    %424 = vmatpush1.msra.mxu0 %v373
    %425 = vmatprep.subr.mxu0 0.0
    %426 = vmatpush1.msra.mxu0 %v374
    %427 = vmatprep.subr.mxu0 0.0
    %428 = vmatpush1.msra.mxu0 %v375
    %429 = vmatprep.subr.mxu0 0.0
    %430 = vmatpush1.msra.mxu0 %v376
    %431 = vmatprep.subr.mxu0 0.0
    %432 = vmatpush1.msra.mxu0 %v377
    %433 = vmatprep.subr.mxu0 0.0
    %434 = vmatpush1.msra.mxu0 %v378
    %435 = vmatprep.subr.mxu0 0.0
    %436 = vmatpush1.msra.mxu0 %v379
    %437 = vmatprep.subr.mxu0 0.0
    %438 = vmatpush1.msra.mxu0 %v380
    %439 = vmatprep.subr.mxu0 0.0
    %440 = vmatpush1.msra.mxu0 %v381
    %441 = vmatprep.subr.mxu0 0.0
    %442 = vmatpush1.msra.mxu0 %v382
    %443 = vmatprep.subr.mxu0 0.0
    %444 = vmatpush1.msra.mxu0 %v383
    %445 = vmatprep.subr.mxu0 0.0
    %446 = vmatpush1.msra.mxu0 %v384
    %447 = vmatprep.subr.mxu0 0.0
    %448 = vmatpush1.msra.mxu0 %v385
    %449 = vmatprep.subr.mxu0 0.0
    %450 = vmatpush1.msra.mxu0 %v386
    %451 = vmatprep.subr.mxu0 0.0
    %452 = vmatpush1.msra.mxu0 %v387
    %453 = vmatprep.subr.mxu0 0.0
    %454 = vmatpush1.msra.mxu0 %v388
    %455 = vmatprep.subr.mxu0 0.0
    %456 = vmatpush1.msra.mxu0 %v389
    %457 = vmatprep.subr.mxu0 0.0
    %458 = vmatpush1.msra.mxu0 %v390
    %459 = vmatprep.subr.mxu0 0.0
    %460 = vmatpush1.msra.mxu0 %v391
    %461 = vmatprep.subr.mxu0 0.0
    %462 = vmatpush1.msra.mxu0 %v392
    %463 = vmatprep.subr.mxu0 0.0
    %464 = vmatpush1.msra.mxu0 %v393
    %465 = vmatprep.mubr.f32.mxu0 %v361
    %466 = vmatmul.mubr.f32.gmra.mrb[0].mxu0 %v360
    %v467 = vpop.f32.mrb[0].mxu0
    %v468 = vadd.f32 %v399, %v467
    %v469 = vpop.f32.mrb[0].mxu0
    %470 = vdwg.mxu0
    %v471 = vmul.f32 %v468, %v468
    %472 = vadd.xlane.f32.xlu0 %v471
    %v473 = vpop.xlane.xlu0 %472
    %v474 = vmul.f32 %v473, 0.0625
    %vm475 = vcmask 7168
    %476 = vst.msk [vmem:[%s8] sm:$0xff] %vm475, %v474
    // Predicated region
    $region50: #{tpu_custom_call.1} parent=1 // pred_check
      _
    $region51: #{tpu_custom_call.1} parent=1 // pred_check_branch
      %478 = sbr.rel (0) target = $region53
    $region52: #{tpu_custom_call.1} parent=1 // pred_region
      _
    $region53: #{tpu_custom_call.1} parent=1 // pred_fallthru
      _
    // Predicated region
    $region54: #{tpu_custom_call.1} parent=1 // pred_check
      _
    $region55: #{tpu_custom_call.1} parent=1 // pred_check_branch
      %480 = sbr.rel (0) target = $region57
    $region56: #{tpu_custom_call.1} parent=1 // pred_region
      _
    $region57: #{tpu_custom_call.1} parent=1 // pred_fallthru
      _
    %481 = vsyncpa [#allocation3], 1
    %482 = vsyncpa [#allocation5], 1
    %483 = vsyncpa [#allocation8], 1

</llo_original>
